<compile_context>
chip_gen: v5e
topology: v5e:2x2
jax: 0.10.0
libtpu: 0.0.40
codegen_flags: <defaults>
</compile_context>

<pallas_src>
import functools
import math

import jax
import jax.numpy as jnp
from jax import lax
from jax.experimental import pallas as pl
from jax.experimental.pallas import tpu as pltpu


def _conv3x3_lane_dense(a, w, b, *, H, W, mask_l, mask_r, relu):
    """3x3 same-padded conv on a channel-major, spatially-flat activation.

    a: (Cin, H*W) bf16, w: (Cout, 9*Cin) bf16 laid out tap-major
    (row = (dy*3+dx)*Cin + ci), b: (Cout, 1) f32.  Returns (Cout, H*W) f32.
    """
    Cin = a.shape[0]
    HW = H * W
    # Flat zero pad of W+1 lanes on each side handles the row (dy) boundaries;
    # only the column (dx) wrap-around needs masking.
    zpad = jnp.zeros((Cin, W + 1), a.dtype)
    ap = jnp.concatenate([zpad, a, zpad], axis=1)          # (Cin, HW + 2W + 2)

    taps = []
    for dy in range(3):
        for dx in range(3):
            off = (W + 1) + (dy - 1) * W + (dx - 1)
            t = ap[:, off:off + HW]                        # shifted tap (Cin, HW)
            if dx == 0:                                    # left neighbour: col 0 invalid
                t = jnp.where(mask_l, t, jnp.zeros_like(t))
            elif dx == 2:                                  # right neighbour: col W-1 invalid
                t = jnp.where(mask_r, t, jnp.zeros_like(t))
            taps.append(t)

    cols = jnp.concatenate(taps, axis=0)                   # im2col: (9*Cin, HW)
    out = jnp.dot(w, cols, preferred_element_type=jnp.float32)   # one MXU pass
    out = out + b                                          # f32 bias, broadcast over lanes
    if relu:
        out = jnp.maximum(out, 0.0)
    return out


def _dicnn2_kernel(x_ref, w1_ref, b1_ref, w2_ref, b2_ref, w3_ref, b3_ref,
                   o_ref, *, H, W):
    """One image per grid step.  x_ref/o_ref: (1, Cin, H*W) f32, lane-dense."""
    HW = H * W
    lane = lax.broadcasted_iota(jnp.int32, (1, HW), 1)
    col = lane % W
    mask_l = col >= 1                                      # valid when dx == -1
    mask_r = col < (W - 1)                                 # valid when dx == +1

    conv = functools.partial(_conv3x3_lane_dense, H=H, W=W,
                             mask_l=mask_l, mask_r=mask_r)

    x = x_ref[0]                                           # (Cin, HW) f32 (residual)
    h = conv(x.astype(jnp.bfloat16), w1_ref[...], b1_ref[...], relu=True)
    h = conv(h.astype(jnp.bfloat16), w2_ref[...], b2_ref[...], relu=True)
    y = conv(h.astype(jnp.bfloat16), w3_ref[...], b3_ref[...], relu=False)
    o_ref[0] = (y + x).astype(o_ref.dtype)                 # fused residual add


def dicnn2_forward(params, input_ms_pan_nchw):
    """Matches DiCNN2.forward; input is NCHW with (input_channels + 1) channels."""
    N, C, H, W = input_ms_pan_nchw.shape
    Cin = C - 1
    HW = H * W
    # Split off the (unused) pan band.  NCHW is already channel-major, so the
    # lane-dense (C, H*W) layout is a free reshape — no transpose needed.
    x = input_ms_pan_nchw[:, :Cin].reshape(N, Cin, HW).astype(jnp.float32)

    def w_tap_major(w):   # (3,3,Cin,Cout) HWIO -> (Cout, 9*Cin) bf16 for the MXU
        cout = w.shape[-1]
        return jnp.transpose(w, (3, 0, 1, 2)).reshape(cout, -1).astype(jnp.bfloat16)

    def b_col(b):         # (Cout,) -> (Cout, 1) f32 (broadcasts over lanes)
        return b.reshape(-1, 1).astype(jnp.float32)

    w1, b1 = w_tap_major(params["w1"]), b_col(params["b1"])
    w2, b2 = w_tap_major(params["w2"]), b_col(params["b2"])
    w3, b3 = w_tap_major(params["w3"]), b_col(params["b3"])

    def replicated(arr):
        return pl.BlockSpec(arr.shape, lambda n: (0,) * arr.ndim)

    out = pl.pallas_call(
        functools.partial(_dicnn2_kernel, H=H, W=W),
        out_shape=jax.ShapeDtypeStruct((N, Cin, HW), jnp.float32),
        grid_spec=pltpu.PrefetchScalarGridSpec(
            num_scalar_prefetch=0,
            grid=(N,),
            in_specs=[
                pl.BlockSpec((1, Cin, HW), lambda n: (n, 0, 0)),
                replicated(w1), replicated(b1),
                replicated(w2), replicated(b2),
                replicated(w3), replicated(b3),
            ],
            out_specs=pl.BlockSpec((1, Cin, HW), lambda n: (n, 0, 0)),
        ),
        compiler_params=pltpu.CompilerParams(
            dimension_semantics=("parallel",)),
    )(x, w1, b1, w2, b2, w3, b3)

    return out.reshape(N, Cin, H, W)                       # NCHW, like PyTorch


def init_dicnn2_params(key, input_channels):
    """Deterministic kaiming-normal conv weights (3,3,Cin,Cout) + default biases."""
    def kaiming(k, cin, cout):
        fan_in = cin * 3 * 3
        std = math.sqrt(2.0 / fan_in)
        return jax.random.normal(k, (3, 3, cin, cout), jnp.float32) * std

    def bias(k, cin, cout):
        bound = 1.0 / math.sqrt(cin * 3 * 3)
        return jax.random.uniform(k, (cout,), jnp.float32, -bound, bound)

    ks = jax.random.split(key, 6)
    return {
        "w1": kaiming(ks[0], input_channels, 64), "b1": bias(ks[1], input_channels, 64),
        "w2": kaiming(ks[2], 64, 64),             "b2": bias(ks[3], 64, 64),
        "w3": kaiming(ks[4], 64, input_channels), "b3": bias(ks[5], 64, input_channels),
    }


def _reference_forward(params, x_nchw):
    """Pure-JAX reference using the same bf16-operand / f32-accumulate flow."""
    C = x_nchw.shape[1]
    ms = jnp.transpose(x_nchw[:, :C - 1], (0, 2, 3, 1)).astype(jnp.float32)  # NHWC

    def conv(a, w, b):
        y = lax.conv_general_dilated(
            a.astype(jnp.bfloat16), w.astype(jnp.bfloat16),
            window_strides=(1, 1), padding="SAME",
            dimension_numbers=("NHWC", "HWIO", "NHWC"),
            preferred_element_type=jnp.float32)
        return y + b

    h = jnp.maximum(conv(ms, params["w1"], params["b1"]), 0.0)
    h = jnp.maximum(conv(h, params["w2"], params["b2"]), 0.0)
    out = conv(h, params["w3"], params["b3"]) + ms
    return jnp.transpose(out, (0, 3, 1, 2))                # NCHW


if __name__ == "__main__":
    input_channels = 4                      # number of MS bands
    N, H, W = 2, 16, 16
    key = jax.random.PRNGKey(0)
    kx, kp = jax.random.split(key)

    # Input has input_channels MS bands + 1 PAN band (NCHW, like PyTorch).
    x = jax.random.normal(kx, (N, input_channels + 1, H, W), jnp.float32)
    params = init_dicnn2_params(kp, input_channels)

    fwd = jax.jit(dicnn2_forward)
    out = jax.block_until_ready(fwd(params, x))
    assert out.shape == (N, input_channels, H, W), out.shape

    ref = jax.block_until_ready(_reference_forward(params, x))
    max_err = float(jnp.max(jnp.abs(out - ref)))
    assert jnp.allclose(out, ref, atol=1e-2, rtol=1e-2), max_err

    print("KERNEL_OK")
</pallas_src>

<mosaic_0001>
module attributes {stable_mosaic.version = 11 : i64} {
  func.func @_dicnn2_kernel(%arg0: i32, %arg1: memref<1x4x256xf32, #tpu.memory_space<vmem>>, %arg2: memref<64x36xbf16, #tpu.memory_space<vmem>>, %arg3: memref<64x1xf32, #tpu.memory_space<vmem>>, %arg4: memref<64x576xbf16, #tpu.memory_space<vmem>>, %arg5: memref<64x1xf32, #tpu.memory_space<vmem>>, %arg6: memref<4x576xbf16, #tpu.memory_space<vmem>>, %arg7: memref<4x1xf32, #tpu.memory_space<vmem>>, %arg8: memref<1x4x256xf32, #tpu.memory_space<vmem>>) attributes {dimension_semantics = [#tpu.dimension_semantics<parallel>], iteration_bounds = array<i64: 2>, scalar_prefetch = 0 : i64, scratch_operands = 0 : i64, tpu.core_type = #tpu.core_type<tc>, window_params = [{transform_indices = @transform_0, window_bounds = array<i64: 1, 4, 256>}, {pipeline_mode = #tpu.pipeline_mode<synchronous>, transform_indices = @transform_1, window_bounds = array<i64: 64, 36>}, {pipeline_mode = #tpu.pipeline_mode<synchronous>, transform_indices = @transform_2, window_bounds = array<i64: 64, 1>}, {pipeline_mode = #tpu.pipeline_mode<synchronous>, transform_indices = @transform_3, window_bounds = array<i64: 64, 576>}, {pipeline_mode = #tpu.pipeline_mode<synchronous>, transform_indices = @transform_4, window_bounds = array<i64: 64, 1>}, {pipeline_mode = #tpu.pipeline_mode<synchronous>, transform_indices = @transform_5, window_bounds = array<i64: 4, 576>}, {pipeline_mode = #tpu.pipeline_mode<synchronous>, transform_indices = @transform_6, window_bounds = array<i64: 4, 1>}, {transform_indices = @transform_7, window_bounds = array<i64: 1, 4, 256>}]} {
    %0 = tpu.iota {dimensions = array<i32: 1>} : vector<1x256xi32>
    %c16_i32 = arith.constant 16 : i32
    %c0_i32 = arith.constant 0 : i32
    %1 = arith.cmpi eq, %c16_i32, %c0_i32 : i32
    %c1_i32 = arith.constant 1 : i32
    %2 = arith.select %1, %c1_i32, %c16_i32 : i32
    %3 = vector.broadcast %2 : i32 to vector<1x256xi32>
    %4 = arith.remsi %0, %3 : vector<1x256xi32>
    %c0_i32_0 = arith.constant 0 : i32
    %5 = vector.broadcast %c0_i32_0 : i32 to vector<1x256xi32>
    %6 = arith.cmpi ne, %4, %5 : vector<1x256xi32>
    %c0_i32_1 = arith.constant 0 : i32
    %7 = vector.broadcast %c0_i32_1 : i32 to vector<1x256xi32>
    %8 = arith.cmpi slt, %4, %7 : vector<1x256xi32>
    %c0_i32_2 = arith.constant 0 : i32
    %9 = arith.cmpi slt, %2, %c0_i32_2 : i32
    %10 = vector.broadcast %9 : i1 to vector<1x256xi1>
    %11 = vector.broadcast %10 : vector<1x256xi1> to vector<1x256xi1>
    %12 = arith.xori %8, %11 : vector<1x256xi1>
    %13 = arith.andi %12, %6 : vector<1x256xi1>
    %14 = vector.broadcast %2 : i32 to vector<1x256xi32>
    %15 = arith.addi %4, %14 : vector<1x256xi32>
    %16 = arith.select %13, %15, %4 : vector<1x256xi1>, vector<1x256xi32>
    %c1_i32_3 = arith.constant 1 : i32
    %17 = vector.broadcast %c1_i32_3 : i32 to vector<1x256xi32>
    %18 = arith.cmpi sge, %16, %17 : vector<1x256xi32>
    %c15_i32 = arith.constant 15 : i32
    %19 = vector.broadcast %c15_i32 : i32 to vector<1x256xi32>
    %20 = arith.cmpi slt, %16, %19 : vector<1x256xi32>
    %c0 = arith.constant 0 : index
    %c0_4 = arith.constant 0 : index
    %c0_5 = arith.constant 0 : index
    %21 = vector.load %arg1[%c0, %c0_4, %c0_5] : memref<1x4x256xf32, #tpu.memory_space<vmem>>, vector<1x4x256xf32>
    %22 = vector.shape_cast %21 : vector<1x4x256xf32> to vector<4x256xf32>
    %23 = arith.truncf %22 : vector<4x256xf32> to vector<4x256xbf16>
    %c0_6 = arith.constant 0 : index
    %c0_7 = arith.constant 0 : index
    %24 = vector.load %arg2[%c0_6, %c0_7] : memref<64x36xbf16, #tpu.memory_space<vmem>>, vector<64x36xbf16>
    %c0_8 = arith.constant 0 : index
    %c0_9 = arith.constant 0 : index
    %25 = vector.load %arg3[%c0_8, %c0_9] : memref<64x1xf32, #tpu.memory_space<vmem>>, vector<64x1xf32>
    %cst = arith.constant 0.000000e+00 : bf16
    %26 = vector.broadcast %cst : bf16 to vector<4x17xbf16>
    %27 = tpu.concatenate %26, %23, %26 in 1 : vector<4x17xbf16>, vector<4x256xbf16>, vector<4x17xbf16> -> vector<4x290xbf16>
    %28 = vector.extract_strided_slice %27 {offsets = [0, 0], sizes = [4, 256], strides = [1, 1]} : vector<4x290xbf16> to vector<4x256xbf16>
    %cst_10 = arith.constant 0.000000e+00 : bf16
    %29 = vector.broadcast %cst_10 : bf16 to vector<4x256xbf16>
    %30 = vector.shape_cast %18 : vector<1x256xi1> to vector<1x256xi1>
    %31 = vector.broadcast %30 : vector<1x256xi1> to vector<4x256xi1>
    %32 = arith.select %31, %28, %29 : vector<4x256xi1>, vector<4x256xbf16>
    %33 = vector.extract_strided_slice %27 {offsets = [0, 1], sizes = [4, 256], strides = [1, 1]} : vector<4x290xbf16> to vector<4x256xbf16>
    %34 = vector.extract_strided_slice %27 {offsets = [0, 2], sizes = [4, 256], strides = [1, 1]} : vector<4x290xbf16> to vector<4x256xbf16>
    %cst_11 = arith.constant 0.000000e+00 : bf16
    %35 = vector.broadcast %cst_11 : bf16 to vector<4x256xbf16>
    %36 = vector.shape_cast %20 : vector<1x256xi1> to vector<1x256xi1>
    %37 = vector.broadcast %36 : vector<1x256xi1> to vector<4x256xi1>
    %38 = arith.select %37, %34, %35 : vector<4x256xi1>, vector<4x256xbf16>
    %39 = vector.extract_strided_slice %27 {offsets = [0, 16], sizes = [4, 256], strides = [1, 1]} : vector<4x290xbf16> to vector<4x256xbf16>
    %cst_12 = arith.constant 0.000000e+00 : bf16
    %40 = vector.broadcast %cst_12 : bf16 to vector<4x256xbf16>
    %41 = vector.shape_cast %18 : vector<1x256xi1> to vector<1x256xi1>
    %42 = vector.broadcast %41 : vector<1x256xi1> to vector<4x256xi1>
    %43 = arith.select %42, %39, %40 : vector<4x256xi1>, vector<4x256xbf16>
    %44 = vector.extract_strided_slice %27 {offsets = [0, 17], sizes = [4, 256], strides = [1, 1]} : vector<4x290xbf16> to vector<4x256xbf16>
    %45 = vector.extract_strided_slice %27 {offsets = [0, 18], sizes = [4, 256], strides = [1, 1]} : vector<4x290xbf16> to vector<4x256xbf16>
    %cst_13 = arith.constant 0.000000e+00 : bf16
    %46 = vector.broadcast %cst_13 : bf16 to vector<4x256xbf16>
    %47 = vector.shape_cast %20 : vector<1x256xi1> to vector<1x256xi1>
    %48 = vector.broadcast %47 : vector<1x256xi1> to vector<4x256xi1>
    %49 = arith.select %48, %45, %46 : vector<4x256xi1>, vector<4x256xbf16>
    %50 = vector.extract_strided_slice %27 {offsets = [0, 32], sizes = [4, 256], strides = [1, 1]} : vector<4x290xbf16> to vector<4x256xbf16>
    %cst_14 = arith.constant 0.000000e+00 : bf16
    %51 = vector.broadcast %cst_14 : bf16 to vector<4x256xbf16>
    %52 = vector.shape_cast %18 : vector<1x256xi1> to vector<1x256xi1>
    %53 = vector.broadcast %52 : vector<1x256xi1> to vector<4x256xi1>
    %54 = arith.select %53, %50, %51 : vector<4x256xi1>, vector<4x256xbf16>
    %55 = vector.extract_strided_slice %27 {offsets = [0, 33], sizes = [4, 256], strides = [1, 1]} : vector<4x290xbf16> to vector<4x256xbf16>
    %56 = vector.extract_strided_slice %27 {offsets = [0, 34], sizes = [4, 256], strides = [1, 1]} : vector<4x290xbf16> to vector<4x256xbf16>
    %cst_15 = arith.constant 0.000000e+00 : bf16
    %57 = vector.broadcast %cst_15 : bf16 to vector<4x256xbf16>
    %58 = vector.shape_cast %20 : vector<1x256xi1> to vector<1x256xi1>
    %59 = vector.broadcast %58 : vector<1x256xi1> to vector<4x256xi1>
    %60 = arith.select %59, %56, %57 : vector<4x256xi1>, vector<4x256xbf16>
    %61 = tpu.concatenate %32, %33, %38, %43, %44, %49, %54, %55, %60 in 0 : vector<4x256xbf16>, vector<4x256xbf16>, vector<4x256xbf16>, vector<4x256xbf16>, vector<4x256xbf16>, vector<4x256xbf16>, vector<4x256xbf16>, vector<4x256xbf16>, vector<4x256xbf16> -> vector<36x256xbf16>
    %cst_16 = arith.constant dense<0.000000e+00> : vector<64x256xf32>
    %62 = tpu.matmul %24, %61, %cst_16 {dimension_numbers = #tpu.dot_dimension_numbers<[1], [0], [0], [1], [0, 0, 1, 1], [], []>} : vector<64x36xbf16>, vector<36x256xbf16>, vector<64x256xf32> -> vector<64x256xf32>
    %63 = vector.broadcast %25 : vector<64x1xf32> to vector<64x256xf32>
    %64 = arith.addf %62, %63 : vector<64x256xf32>
    %cst_17 = arith.constant 0.000000e+00 : f32
    %65 = vector.broadcast %cst_17 : f32 to vector<64x256xf32>
    %66 = arith.maximumf %64, %65 : vector<64x256xf32>
    %67 = arith.truncf %66 : vector<64x256xf32> to vector<64x256xbf16>
    %c0_18 = arith.constant 0 : index
    %c0_19 = arith.constant 0 : index
    %68 = vector.load %arg4[%c0_18, %c0_19] : memref<64x576xbf16, #tpu.memory_space<vmem>>, vector<64x576xbf16>
    %c0_20 = arith.constant 0 : index
    %c0_21 = arith.constant 0 : index
    %69 = vector.load %arg5[%c0_20, %c0_21] : memref<64x1xf32, #tpu.memory_space<vmem>>, vector<64x1xf32>
    %cst_22 = arith.constant 0.000000e+00 : bf16
    %70 = vector.broadcast %cst_22 : bf16 to vector<64x17xbf16>
    %71 = tpu.concatenate %70, %67, %70 in 1 : vector<64x17xbf16>, vector<64x256xbf16>, vector<64x17xbf16> -> vector<64x290xbf16>
    %72 = vector.extract_strided_slice %71 {offsets = [0, 0], sizes = [64, 256], strides = [1, 1]} : vector<64x290xbf16> to vector<64x256xbf16>
    %cst_23 = arith.constant 0.000000e+00 : bf16
    %73 = vector.broadcast %cst_23 : bf16 to vector<64x256xbf16>
    %74 = vector.shape_cast %18 : vector<1x256xi1> to vector<1x256xi1>
    %75 = vector.broadcast %74 : vector<1x256xi1> to vector<64x256xi1>
    %76 = arith.select %75, %72, %73 : vector<64x256xi1>, vector<64x256xbf16>
    %77 = vector.extract_strided_slice %71 {offsets = [0, 1], sizes = [64, 256], strides = [1, 1]} : vector<64x290xbf16> to vector<64x256xbf16>
    %78 = vector.extract_strided_slice %71 {offsets = [0, 2], sizes = [64, 256], strides = [1, 1]} : vector<64x290xbf16> to vector<64x256xbf16>
    %cst_24 = arith.constant 0.000000e+00 : bf16
    %79 = vector.broadcast %cst_24 : bf16 to vector<64x256xbf16>
    %80 = vector.shape_cast %20 : vector<1x256xi1> to vector<1x256xi1>
    %81 = vector.broadcast %80 : vector<1x256xi1> to vector<64x256xi1>
    %82 = arith.select %81, %78, %79 : vector<64x256xi1>, vector<64x256xbf16>
    %83 = vector.extract_strided_slice %71 {offsets = [0, 16], sizes = [64, 256], strides = [1, 1]} : vector<64x290xbf16> to vector<64x256xbf16>
    %cst_25 = arith.constant 0.000000e+00 : bf16
    %84 = vector.broadcast %cst_25 : bf16 to vector<64x256xbf16>
    %85 = vector.shape_cast %18 : vector<1x256xi1> to vector<1x256xi1>
    %86 = vector.broadcast %85 : vector<1x256xi1> to vector<64x256xi1>
    %87 = arith.select %86, %83, %84 : vector<64x256xi1>, vector<64x256xbf16>
    %88 = vector.extract_strided_slice %71 {offsets = [0, 17], sizes = [64, 256], strides = [1, 1]} : vector<64x290xbf16> to vector<64x256xbf16>
    %89 = vector.extract_strided_slice %71 {offsets = [0, 18], sizes = [64, 256], strides = [1, 1]} : vector<64x290xbf16> to vector<64x256xbf16>
    %cst_26 = arith.constant 0.000000e+00 : bf16
    %90 = vector.broadcast %cst_26 : bf16 to vector<64x256xbf16>
    %91 = vector.shape_cast %20 : vector<1x256xi1> to vector<1x256xi1>
    %92 = vector.broadcast %91 : vector<1x256xi1> to vector<64x256xi1>
    %93 = arith.select %92, %89, %90 : vector<64x256xi1>, vector<64x256xbf16>
    %94 = vector.extract_strided_slice %71 {offsets = [0, 32], sizes = [64, 256], strides = [1, 1]} : vector<64x290xbf16> to vector<64x256xbf16>
    %cst_27 = arith.constant 0.000000e+00 : bf16
    %95 = vector.broadcast %cst_27 : bf16 to vector<64x256xbf16>
    %96 = vector.shape_cast %18 : vector<1x256xi1> to vector<1x256xi1>
    %97 = vector.broadcast %96 : vector<1x256xi1> to vector<64x256xi1>
    %98 = arith.select %97, %94, %95 : vector<64x256xi1>, vector<64x256xbf16>
    %99 = vector.extract_strided_slice %71 {offsets = [0, 33], sizes = [64, 256], strides = [1, 1]} : vector<64x290xbf16> to vector<64x256xbf16>
    %100 = vector.extract_strided_slice %71 {offsets = [0, 34], sizes = [64, 256], strides = [1, 1]} : vector<64x290xbf16> to vector<64x256xbf16>
    %cst_28 = arith.constant 0.000000e+00 : bf16
    %101 = vector.broadcast %cst_28 : bf16 to vector<64x256xbf16>
    %102 = vector.shape_cast %20 : vector<1x256xi1> to vector<1x256xi1>
    %103 = vector.broadcast %102 : vector<1x256xi1> to vector<64x256xi1>
    %104 = arith.select %103, %100, %101 : vector<64x256xi1>, vector<64x256xbf16>
    %105 = tpu.concatenate %76, %77, %82, %87, %88, %93, %98, %99, %104 in 0 : vector<64x256xbf16>, vector<64x256xbf16>, vector<64x256xbf16>, vector<64x256xbf16>, vector<64x256xbf16>, vector<64x256xbf16>, vector<64x256xbf16>, vector<64x256xbf16>, vector<64x256xbf16> -> vector<576x256xbf16>
    %cst_29 = arith.constant dense<0.000000e+00> : vector<64x256xf32>
    %106 = tpu.matmul %68, %105, %cst_29 {dimension_numbers = #tpu.dot_dimension_numbers<[1], [0], [0], [1], [0, 0, 1, 1], [], []>} : vector<64x576xbf16>, vector<576x256xbf16>, vector<64x256xf32> -> vector<64x256xf32>
    %107 = vector.broadcast %69 : vector<64x1xf32> to vector<64x256xf32>
    %108 = arith.addf %106, %107 : vector<64x256xf32>
    %cst_30 = arith.constant 0.000000e+00 : f32
    %109 = vector.broadcast %cst_30 : f32 to vector<64x256xf32>
    %110 = arith.maximumf %108, %109 : vector<64x256xf32>
    %111 = arith.truncf %110 : vector<64x256xf32> to vector<64x256xbf16>
    %c0_31 = arith.constant 0 : index
    %c0_32 = arith.constant 0 : index
    %112 = vector.load %arg6[%c0_31, %c0_32] : memref<4x576xbf16, #tpu.memory_space<vmem>>, vector<4x576xbf16>
    %c0_33 = arith.constant 0 : index
    %c0_34 = arith.constant 0 : index
    %113 = vector.load %arg7[%c0_33, %c0_34] : memref<4x1xf32, #tpu.memory_space<vmem>>, vector<4x1xf32>
    %cst_35 = arith.constant 0.000000e+00 : bf16
    %114 = vector.broadcast %cst_35 : bf16 to vector<64x17xbf16>
    %115 = tpu.concatenate %114, %111, %114 in 1 : vector<64x17xbf16>, vector<64x256xbf16>, vector<64x17xbf16> -> vector<64x290xbf16>
    %116 = vector.extract_strided_slice %115 {offsets = [0, 0], sizes = [64, 256], strides = [1, 1]} : vector<64x290xbf16> to vector<64x256xbf16>
    %cst_36 = arith.constant 0.000000e+00 : bf16
    %117 = vector.broadcast %cst_36 : bf16 to vector<64x256xbf16>
    %118 = vector.shape_cast %18 : vector<1x256xi1> to vector<1x256xi1>
    %119 = vector.broadcast %118 : vector<1x256xi1> to vector<64x256xi1>
    %120 = arith.select %119, %116, %117 : vector<64x256xi1>, vector<64x256xbf16>
    %121 = vector.extract_strided_slice %115 {offsets = [0, 1], sizes = [64, 256], strides = [1, 1]} : vector<64x290xbf16> to vector<64x256xbf16>
    %122 = vector.extract_strided_slice %115 {offsets = [0, 2], sizes = [64, 256], strides = [1, 1]} : vector<64x290xbf16> to vector<64x256xbf16>
    %cst_37 = arith.constant 0.000000e+00 : bf16
    %123 = vector.broadcast %cst_37 : bf16 to vector<64x256xbf16>
    %124 = vector.shape_cast %20 : vector<1x256xi1> to vector<1x256xi1>
    %125 = vector.broadcast %124 : vector<1x256xi1> to vector<64x256xi1>
    %126 = arith.select %125, %122, %123 : vector<64x256xi1>, vector<64x256xbf16>
    %127 = vector.extract_strided_slice %115 {offsets = [0, 16], sizes = [64, 256], strides = [1, 1]} : vector<64x290xbf16> to vector<64x256xbf16>
    %cst_38 = arith.constant 0.000000e+00 : bf16
    %128 = vector.broadcast %cst_38 : bf16 to vector<64x256xbf16>
    %129 = vector.shape_cast %18 : vector<1x256xi1> to vector<1x256xi1>
    %130 = vector.broadcast %129 : vector<1x256xi1> to vector<64x256xi1>
    %131 = arith.select %130, %127, %128 : vector<64x256xi1>, vector<64x256xbf16>
    %132 = vector.extract_strided_slice %115 {offsets = [0, 17], sizes = [64, 256], strides = [1, 1]} : vector<64x290xbf16> to vector<64x256xbf16>
    %133 = vector.extract_strided_slice %115 {offsets = [0, 18], sizes = [64, 256], strides = [1, 1]} : vector<64x290xbf16> to vector<64x256xbf16>
    %cst_39 = arith.constant 0.000000e+00 : bf16
    %134 = vector.broadcast %cst_39 : bf16 to vector<64x256xbf16>
    %135 = vector.shape_cast %20 : vector<1x256xi1> to vector<1x256xi1>
    %136 = vector.broadcast %135 : vector<1x256xi1> to vector<64x256xi1>
    %137 = arith.select %136, %133, %134 : vector<64x256xi1>, vector<64x256xbf16>
    %138 = vector.extract_strided_slice %115 {offsets = [0, 32], sizes = [64, 256], strides = [1, 1]} : vector<64x290xbf16> to vector<64x256xbf16>
    %cst_40 = arith.constant 0.000000e+00 : bf16
    %139 = vector.broadcast %cst_40 : bf16 to vector<64x256xbf16>
    %140 = vector.shape_cast %18 : vector<1x256xi1> to vector<1x256xi1>
    %141 = vector.broadcast %140 : vector<1x256xi1> to vector<64x256xi1>
    %142 = arith.select %141, %138, %139 : vector<64x256xi1>, vector<64x256xbf16>
    %143 = vector.extract_strided_slice %115 {offsets = [0, 33], sizes = [64, 256], strides = [1, 1]} : vector<64x290xbf16> to vector<64x256xbf16>
    %144 = vector.extract_strided_slice %115 {offsets = [0, 34], sizes = [64, 256], strides = [1, 1]} : vector<64x290xbf16> to vector<64x256xbf16>
    %cst_41 = arith.constant 0.000000e+00 : bf16
    %145 = vector.broadcast %cst_41 : bf16 to vector<64x256xbf16>
    %146 = vector.shape_cast %20 : vector<1x256xi1> to vector<1x256xi1>
    %147 = vector.broadcast %146 : vector<1x256xi1> to vector<64x256xi1>
    %148 = arith.select %147, %144, %145 : vector<64x256xi1>, vector<64x256xbf16>
    %149 = tpu.concatenate %120, %121, %126, %131, %132, %137, %142, %143, %148 in 0 : vector<64x256xbf16>, vector<64x256xbf16>, vector<64x256xbf16>, vector<64x256xbf16>, vector<64x256xbf16>, vector<64x256xbf16>, vector<64x256xbf16>, vector<64x256xbf16>, vector<64x256xbf16> -> vector<576x256xbf16>
    %cst_42 = arith.constant dense<0.000000e+00> : vector<4x256xf32>
    %150 = tpu.matmul %112, %149, %cst_42 {dimension_numbers = #tpu.dot_dimension_numbers<[1], [0], [0], [1], [0, 0, 1, 1], [], []>} : vector<4x576xbf16>, vector<576x256xbf16>, vector<4x256xf32> -> vector<4x256xf32>
    %151 = vector.broadcast %113 : vector<4x1xf32> to vector<4x256xf32>
    %152 = arith.addf %150, %151 : vector<4x256xf32>
    %153 = arith.addf %152, %22 : vector<4x256xf32>
    %c0_43 = arith.constant 0 : index
    %c0_44 = arith.constant 0 : index
    %c0_45 = arith.constant 0 : index
    %154 = vector.load %arg8[%c0_43, %c0_44, %c0_45] : memref<1x4x256xf32, #tpu.memory_space<vmem>>, vector<1x4x256xf32>
    %155 = vector.shape_cast %154 : vector<1x4x256xf32> to vector<4x256xf32>
    %156 = vector.shape_cast %153 : vector<4x256xf32> to vector<1x4x256xf32>
    tpu.vector_store %arg8[%c0_43, %c0_44, %c0_45], %156 {strides = array<i32>} : memref<1x4x256xf32, #tpu.memory_space<vmem>>, vector<1x4x256xf32>,
    return
  }
  func.func @transform_0(%arg0: i32) -> (i32, i32, i32) {
    %c0_i32 = arith.constant 0 : i32
    %c0_i32_0 = arith.constant 0 : i32
    %c0_i32_1 = arith.constant 0 : i32
    return %arg0, %c0_i32, %c0_i32_0 : i32, i32, i32
  }
  func.func @transform_1(%arg0: i32) -> (i32, i32) {
    %c0_i32 = arith.constant 0 : i32
    %c0_i32_0 = arith.constant 0 : i32
    %c0_i32_1 = arith.constant 0 : i32
    return %c0_i32, %c0_i32_0 : i32, i32
  }
  func.func @transform_2(%arg0: i32) -> (i32, i32) {
    %c0_i32 = arith.constant 0 : i32
    %c0_i32_0 = arith.constant 0 : i32
    %c0_i32_1 = arith.constant 0 : i32
    return %c0_i32, %c0_i32_0 : i32, i32
  }
  func.func @transform_3(%arg0: i32) -> (i32, i32) {
    %c0_i32 = arith.constant 0 : i32
    %c0_i32_0 = arith.constant 0 : i32
    %c0_i32_1 = arith.constant 0 : i32
    return %c0_i32, %c0_i32_0 : i32, i32
  }
  func.func @transform_4(%arg0: i32) -> (i32, i32) {
    %c0_i32 = arith.constant 0 : i32
    %c0_i32_0 = arith.constant 0 : i32
    %c0_i32_1 = arith.constant 0 : i32
    return %c0_i32, %c0_i32_0 : i32, i32
  }
  func.func @transform_5(%arg0: i32) -> (i32, i32) {
    %c0_i32 = arith.constant 0 : i32
    %c0_i32_0 = arith.constant 0 : i32
    %c0_i32_1 = arith.constant 0 : i32
    return %c0_i32, %c0_i32_0 : i32, i32
  }
  func.func @transform_6(%arg0: i32) -> (i32, i32) {
    %c0_i32 = arith.constant 0 : i32
    %c0_i32_0 = arith.constant 0 : i32
    %c0_i32_1 = arith.constant 0 : i32
    return %c0_i32, %c0_i32_0 : i32, i32
  }
  func.func @transform_7(%arg0: i32) -> (i32, i32, i32) {
    %c0_i32 = arith.constant 0 : i32
    %c0_i32_0 = arith.constant 0 : i32
    %c0_i32_1 = arith.constant 0 : i32
    return %arg0, %c0_i32, %c0_i32_0 : i32, i32, i32
  }
}

</mosaic_0001>

<llo_original>
// kernel: dicnn2_forward.1
$region0: #{dicnn2_forward.1}
  #allocation0 [shape = 'u32[]', space=smem, size = 0x4, offset = 0x4, fixed_abs, tag = 'smem constant byte address 0x4 - core index']
  #allocation1 [shape = 'u32[72,128]{1,0:T(1,128)}', space=vmem, size = 0x9000, scoped, tag = 'internal scratch']
  %s0 = inlined_call_operand.vmem [shape: f32[2,4,256], index: 0, kind: input, shape index: {}]
  %s1 = inlined_call_operand.vmem [shape: bf16[64,36], index: 1, kind: input, shape index: {}]
  %s2 = inlined_call_operand.vmem [shape: f32[64,1], index: 2, kind: input, shape index: {}]
  %s3 = inlined_call_operand.vmem [shape: bf16[64,576], index: 3, kind: input, shape index: {}]
  %s4 = inlined_call_operand.vmem [shape: f32[64,1], index: 4, kind: input, shape index: {}]
  %s5 = inlined_call_operand.vmem [shape: bf16[4,576], index: 5, kind: input, shape index: {}]
  %s6 = inlined_call_operand.vmem [shape: f32[4,1], index: 6, kind: input, shape index: {}]
  %s7 = inlined_call_operand.vmem [shape: f32[2,4,256], index: 7, kind: output, shape index: {}]
  %s8 = sld [smem:[#allocation0]]
  $region61: #{dicnn2_forward.1} parent=0
    _
  %s10 = ssub.s32 1, %s8
  %s11 = scalar_select 0, %s10, %s8
  loop: start=0, step=1, limit=4
  $region2: #{dicnn2_forward.1} parent=0 // loop_pre_header
    _
  $region3: #{dicnn2_forward.1} parent=0 // loop_header
    %s13 = sphi 0, %s17
    %p14 = scmp.ge.s32.totalorder %s13, 4
    %s23 = sphi 0, %s25
    %s26 = sphi 0, %s23
    %s27 = sphi 0, %s26
    %s43 = sphi 0, %s27
    %s47 = sphi 0, %s47
    %s49 = sphi 0, %s47
    %s50 = sphi 0, %s49
    %s64 = sphi 0, %s50
    %s68 = sphi 0, %s68
    %s70 = sphi 0, %s68
    %s71 = sphi 0, %s70
    %s85 = sphi 0, %s71
    %s89 = sphi 0, %s89
    %s91 = sphi 0, %s89
    %s92 = sphi 0, %s91
    %s106 = sphi 0, %s92
    %s110 = sphi 0, %s110
    %s112 = sphi 0, %s110
    %s113 = sphi 0, %s112
    %s127 = sphi 0, %s113
    %s131 = sphi 0, %s131
    %s133 = sphi 0, %s131
    %s134 = sphi 0, %s133
    %s148 = sphi 0, %s134
    %s152 = sphi 0, %s152
    %s154 = sphi 0, %s152
    %s155 = sphi 0, %s154
    %s169 = sphi 0, %s155
    %s175 = sphi 0, %s177
    %s178 = sphi 0, %s175
    %s179 = sphi 0, %s178
    %s195 = sphi 0, %s179
  $region4: #{dicnn2_forward.1} parent=0 // loop_header_branch
    %16 = sbr.rel (%p14) target = $region8
  $region5: #{dicnn2_forward.1} parent=0 // loop_body
    %s18 = ssub.s32 %s13, 1
    %s19 = ssub.s32 %s13, 2
    %s20 = sadd.s32 %s13, 1
    %s21 = ssub.s32 %s13, %s20
    %p22 = scmp.eq.s32.totalorder %s21, 0
    %s24 = sadd.s32 %s23, 1
    %s25 = scalar_select %p22, %s23, %s24
    %p28 = pneg %p22
    %p29 = scmp.eq.s32.totalorder %s13, 1
    %p30 = por %p28, %p29
    %p31 = scmp.ne.s32.totalorder %s23, %s26
    %p32 = scmp.eq.s32.totalorder %s13, 0
    %p33 = por %p31, %p32
    %p34 = scmp.ne.s32.totalorder %s23, %s26
    %p35 = scmp.eq.s32.totalorder %s18, 1
    %p36 = por %p34, %p35
    %p37 = scmp.ne.s32.totalorder %s26, %s27
    %p38 = scmp.eq.s32.totalorder %s18, 0
    %p39 = por %p37, %p38
    %p40 = scmp.ne.s32.totalorder %s26, %s27
    %p41 = scmp.eq.s32.totalorder %s19, 1
    %p42 = por %p40, %p41
    %p44 = scmp.ne.s32.totalorder %s27, %s43
    %p45 = scmp.eq.s32.totalorder %s19, 0
    %p46 = por %p44, %p45
    %s48 = sadd.s32 %s47, 1
    %p51 = scmp.eq.s32.totalorder %s13, 1
    %p52 = scmp.ne.s32.totalorder %s47, %s49
    %p53 = scmp.eq.s32.totalorder %s13, 0
    %p54 = por %p52, %p53
    %p55 = scmp.ne.s32.totalorder %s47, %s49
    %p56 = scmp.eq.s32.totalorder %s18, 1
    %p57 = por %p55, %p56
    %p58 = scmp.ne.s32.totalorder %s49, %s50
    %p59 = scmp.eq.s32.totalorder %s18, 0
    %p60 = por %p58, %p59
    %p61 = scmp.ne.s32.totalorder %s49, %s50
    %p62 = scmp.eq.s32.totalorder %s19, 1
    %p63 = por %p61, %p62
    %p65 = scmp.ne.s32.totalorder %s50, %s64
    %p66 = scmp.eq.s32.totalorder %s19, 0
    %p67 = por %p65, %p66
    %s69 = sadd.s32 %s68, 1
    %p72 = scmp.eq.s32.totalorder %s13, 1
    %p73 = scmp.ne.s32.totalorder %s68, %s70
    %p74 = scmp.eq.s32.totalorder %s13, 0
    %p75 = por %p73, %p74
    %p76 = scmp.ne.s32.totalorder %s68, %s70
    %p77 = scmp.eq.s32.totalorder %s18, 1
    %p78 = por %p76, %p77
    %p79 = scmp.ne.s32.totalorder %s70, %s71
    %p80 = scmp.eq.s32.totalorder %s18, 0
    %p81 = por %p79, %p80
    %p82 = scmp.ne.s32.totalorder %s70, %s71
    %p83 = scmp.eq.s32.totalorder %s19, 1
    %p84 = por %p82, %p83
    %p86 = scmp.ne.s32.totalorder %s71, %s85
    %p87 = scmp.eq.s32.totalorder %s19, 0
    %p88 = por %p86, %p87
    %s90 = sadd.s32 %s89, 1
    %p93 = scmp.eq.s32.totalorder %s13, 1
    %p94 = scmp.ne.s32.totalorder %s89, %s91
    %p95 = scmp.eq.s32.totalorder %s13, 0
    %p96 = por %p94, %p95
    %p97 = scmp.ne.s32.totalorder %s89, %s91
    %p98 = scmp.eq.s32.totalorder %s18, 1
    %p99 = por %p97, %p98
    %p100 = scmp.ne.s32.totalorder %s91, %s92
    %p101 = scmp.eq.s32.totalorder %s18, 0
    %p102 = por %p100, %p101
    %p103 = scmp.ne.s32.totalorder %s91, %s92
    %p104 = scmp.eq.s32.totalorder %s19, 1
    %p105 = por %p103, %p104
    %p107 = scmp.ne.s32.totalorder %s92, %s106
    %p108 = scmp.eq.s32.totalorder %s19, 0
    %p109 = por %p107, %p108
    %s111 = sadd.s32 %s110, 1
    %p114 = scmp.eq.s32.totalorder %s13, 1
    %p115 = scmp.ne.s32.totalorder %s110, %s112
    %p116 = scmp.eq.s32.totalorder %s13, 0
    %p117 = por %p115, %p116
    %p118 = scmp.ne.s32.totalorder %s110, %s112
    %p119 = scmp.eq.s32.totalorder %s18, 1
    %p120 = por %p118, %p119
    %p121 = scmp.ne.s32.totalorder %s112, %s113
    %p122 = scmp.eq.s32.totalorder %s18, 0
    %p123 = por %p121, %p122
    %p124 = scmp.ne.s32.totalorder %s112, %s113
    %p125 = scmp.eq.s32.totalorder %s19, 1
    %p126 = por %p124, %p125
    %p128 = scmp.ne.s32.totalorder %s113, %s127
    %p129 = scmp.eq.s32.totalorder %s19, 0
    %p130 = por %p128, %p129
    %s132 = sadd.s32 %s131, 1
    %p135 = scmp.eq.s32.totalorder %s13, 1
    %p136 = scmp.ne.s32.totalorder %s131, %s133
    %p137 = scmp.eq.s32.totalorder %s13, 0
    %p138 = por %p136, %p137
    %p139 = scmp.ne.s32.totalorder %s131, %s133
    %p140 = scmp.eq.s32.totalorder %s18, 1
    %p141 = por %p139, %p140
    %p142 = scmp.ne.s32.totalorder %s133, %s134
    %p143 = scmp.eq.s32.totalorder %s18, 0
    %p144 = por %p142, %p143
    %p145 = scmp.ne.s32.totalorder %s133, %s134
    %p146 = scmp.eq.s32.totalorder %s19, 1
    %p147 = por %p145, %p146
    %p149 = scmp.ne.s32.totalorder %s134, %s148
    %p150 = scmp.eq.s32.totalorder %s19, 0
    %p151 = por %p149, %p150
    %s153 = sadd.s32 %s152, 1
    %p156 = scmp.eq.s32.totalorder %s13, 1
    %p157 = scmp.ne.s32.totalorder %s152, %s154
    %p158 = scmp.eq.s32.totalorder %s13, 0
    %p159 = por %p157, %p158
    %p160 = scmp.ne.s32.totalorder %s152, %s154
    %p161 = scmp.eq.s32.totalorder %s18, 1
    %p162 = por %p160, %p161
    %p163 = scmp.ne.s32.totalorder %s154, %s155
    %p164 = scmp.eq.s32.totalorder %s18, 0
    %p165 = por %p163, %p164
    %p166 = scmp.ne.s32.totalorder %s154, %s155
    %p167 = scmp.eq.s32.totalorder %s19, 1
    %p168 = por %p166, %p167
    %p170 = scmp.ne.s32.totalorder %s155, %s169
    %p171 = scmp.eq.s32.totalorder %s19, 0
    %p172 = por %p170, %p171
    %s173 = ssub.s32 %s13, %s20
    %p174 = scmp.eq.s32.totalorder %s173, 0
    %s176 = sadd.s32 %s175, 1
    %s177 = scalar_select %p174, %s175, %s176
    %p180 = pneg %p174
    %p181 = scmp.eq.s32.totalorder %s13, 1
    %p182 = por %p180, %p181
    %p183 = scmp.ne.s32.totalorder %s175, %s178
    %p184 = scmp.eq.s32.totalorder %s13, 0
    %p185 = por %p183, %p184
    %p186 = scmp.ne.s32.totalorder %s175, %s178
    %p187 = scmp.eq.s32.totalorder %s18, 1
    %p188 = por %p186, %p187
    %p189 = scmp.ne.s32.totalorder %s178, %s179
    %p190 = scmp.eq.s32.totalorder %s18, 0
    %p191 = por %p189, %p190
    %p192 = scmp.ne.s32.totalorder %s178, %s179
    %p193 = scmp.eq.s32.totalorder %s19, 1
    %p194 = por %p192, %p193
    %p196 = scmp.ne.s32.totalorder %s179, %s195
    %p197 = scmp.eq.s32.totalorder %s19, 0
    %p198 = por %p196, %p197
    %p199 = scmp.le.s32.totalorder 1, %s13
    %p200 = scmp.lt.s32.totalorder %s13, 3
    %p201 = pnand %p199, %p200
    %p202 = pneg %p201
    // Predicated region
    $region9: #{dicnn2_forward.1} parent=5 // pred_check
      _
    $region10: #{dicnn2_forward.1} parent=5 // pred_check_branch
      %204 = sbr.rel (%p201) target = $region12
    $region11: #{dicnn2_forward.1} parent=5 // pred_region
      %s205 = ssub.s32 %s13, 1
      // Predicated region
      $region13: #{dicnn2_forward.1} parent=11 // pred_check
        %p206 = pneg %p60
      $region14: #{dicnn2_forward.1} parent=11 // pred_check_branch
        %208 = sbr.rel (%p206) target = $region16
      $region15: #{dicnn2_forward.1} parent=11 // pred_region
        _
      $region16: #{dicnn2_forward.1} parent=11 // pred_fallthru
        _
      // Predicated region
      $region17: #{dicnn2_forward.1} parent=11 // pred_check
        %p209 = pneg %p81
      $region18: #{dicnn2_forward.1} parent=11 // pred_check_branch
        %211 = sbr.rel (%p209) target = $region20
      $region19: #{dicnn2_forward.1} parent=11 // pred_region
        _
      $region20: #{dicnn2_forward.1} parent=11 // pred_fallthru
        _
      // Predicated region
      $region21: #{dicnn2_forward.1} parent=11 // pred_check
        %p212 = pneg %p102
      $region22: #{dicnn2_forward.1} parent=11 // pred_check_branch
        %214 = sbr.rel (%p212) target = $region24
      $region23: #{dicnn2_forward.1} parent=11 // pred_region
        _
      $region24: #{dicnn2_forward.1} parent=11 // pred_fallthru
        _
      // Predicated region
      $region25: #{dicnn2_forward.1} parent=11 // pred_check
        %p215 = pneg %p123
      $region26: #{dicnn2_forward.1} parent=11 // pred_check_branch
        %217 = sbr.rel (%p215) target = $region28
      $region27: #{dicnn2_forward.1} parent=11 // pred_region
        _
      $region28: #{dicnn2_forward.1} parent=11 // pred_fallthru
        _
      // Predicated region
      $region29: #{dicnn2_forward.1} parent=11 // pred_check
        %p218 = pneg %p144
      $region30: #{dicnn2_forward.1} parent=11 // pred_check_branch
        %220 = sbr.rel (%p218) target = $region32
      $region31: #{dicnn2_forward.1} parent=11 // pred_region
        _
      $region32: #{dicnn2_forward.1} parent=11 // pred_fallthru
        _
      // Predicated region
      $region33: #{dicnn2_forward.1} parent=11 // pred_check
        %p221 = pneg %p165
      $region34: #{dicnn2_forward.1} parent=11 // pred_check_branch
        %223 = sbr.rel (%p221) target = $region36
      $region35: #{dicnn2_forward.1} parent=11 // pred_region
        _
      $region36: #{dicnn2_forward.1} parent=11 // pred_fallthru
        _
    $region12: #{dicnn2_forward.1} parent=5 // pred_fallthru
      _
    %p224 = scmp.lt.s32.totalorder %s13, 2
    // Predicated region
    $region37: #{dicnn2_forward.1} parent=5 // pred_check
      %p225 = pneg %p224
    $region38: #{dicnn2_forward.1} parent=5 // pred_check_branch
      %227 = sbr.rel (%p225) target = $region40
    $region39: #{dicnn2_forward.1} parent=5 // pred_region
      // Predicated region
      $region41: #{dicnn2_forward.1} parent=39 // pred_check
        %p228 = pneg %p33
      $region42: #{dicnn2_forward.1} parent=39 // pred_check_branch
        %230 = sbr.rel (%p228) target = $region44
      $region43: #{dicnn2_forward.1} parent=39 // pred_region
        %p231 = scmp.lt.s32.totalorder %s13, 1
        %s232 = scalar_select %p231, %s13, 1
        %s233 = smul.addr %s232, 2
        %s234 = smul.addr %s233, 4
        %s235 = scalar_lea.vmem %s0, %s234
      $region44: #{dicnn2_forward.1} parent=39 // pred_fallthru
        _
    $region40: #{dicnn2_forward.1} parent=5 // pred_fallthru
      _
    %p236 = scmp.le.s32.totalorder 1, %s13
    %p237 = scmp.lt.s32.totalorder %s13, 3
    %p238 = pnand %p236, %p237
    %p239 = pneg %p238
    // Predicated region
    $region45: #{dicnn2_forward.1} parent=5 // pred_check
      _
    $region46: #{dicnn2_forward.1} parent=5 // pred_check_branch
      %241 = sbr.rel (%p238) target = $region48
    $region47: #{dicnn2_forward.1} parent=5 // pred_region
      %s242 = ssub.s32 %s13, 1
      %p243 = scmp.lt.s32.totalorder %s18, 1
      %s244 = scalar_select %p243, %s18, 1
      %s245 = smul.addr %s244, 2
      %s246 = smul.addr %s245, 4
      %s247 = scalar_lea.vmem %s0, %s246
      %p248 = pneg %p39
      %p249 = pneg %p36
      %p250 = pneg %p60
      %p251 = pneg %p57
      %p252 = pneg %p81
      %p253 = pneg %p78
      %p254 = pneg %p102
      %p255 = pneg %p99
      %p256 = pneg %p123
      %p257 = pneg %p120
      %p258 = pneg %p144
      %p259 = pneg %p141
      %p260 = pneg %p165
      %p261 = pneg %p162
      %p262 = pneg %p191
      %p263 = pneg %p188
      %p264 = scmp.lt.s32.totalorder %s18, 1
      %s265 = scalar_select %p264, %s18, 1
      %s266 = smul.addr %s265, 2
      %s267 = smul.addr %s266, 4
      %s268 = scalar_lea.vmem %s7, %s267
      %p269 = scmp.lt.s32.totalorder %s18, 1
      %s270 = scalar_select %p269, %s18, 1
      %s271 = smul.addr %s270, 2
      %s272 = smul.addr %s271, 4
      %s273 = scalar_lea.vmem %s0, %s272
      %p274 = scmp.lt.s32.totalorder %s18, 1
      %s275 = scalar_select %p274, %s18, 1
      %s276 = smul.addr %s275, 2
      %s277 = smul.addr %s276, 4
      %s278 = scalar_lea.vmem %s7, %s277
      %v282 = vlaneseq
      %v283 = vand.u32 %v282, 127
      %v284 = vadd.s32 %v283, 128
      %vm285 = vcmp.lt.s32.totalorder %v283, 0
      %v286 = vsub.s32 0, %v283
      %v287 = vsel %vm285, %v286, %v283
      %v288 = vshrl.u32 %v287, 4
      %v289 = vand.u32 %v287, 15
      %v290 = vsub.s32 0, %v289
      %v291 = vsel %vm285, %v290, %v289
      %vm292 = vcmp.lt.s32.totalorder %v284, 0
      %v293 = vsub.s32 0, %v284
      %v294 = vsel %vm292, %v293, %v284
      %v295 = vshrl.u32 %v294, 4
      %v296 = vand.u32 %v294, 15
      %v297 = vsub.s32 0, %v296
      %v298 = vsel %vm292, %v297, %v296
      %vm299 = vcmp.ne.s32.totalorder %v291, 0
      %vm300 = vcmp.ne.s32.totalorder %v298, 0
      %vm301 = vcmp.lt.s32.totalorder %v291, 0
      %vm302 = vcmp.lt.s32.totalorder %v298, 0
      %vm303 = vmand %vm301, %vm299
      %vm304 = vmand %vm302, %vm300
      %v305 = vadd.s32 %v291, 16
      %v306 = vadd.s32 %v298, 16
      %v307 = vsel %vm303, %v305, %v291
      %v308 = vsel %vm304, %v306, %v298
      %vm309 = vcmp.ge.s32.totalorder %v307, 1
      %vm310 = vcmp.ge.s32.totalorder %v308, 1
      %vm311 = vcmp.lt.s32.totalorder %v307, 15
      %vm312 = vcmp.lt.s32.totalorder %v308, 15
      %v313 = vld [vmem:[%s273] sm:$0xff]
      %315 = vst [vmem:[#allocation1] ss:$2 sm:$0xff] %v313
      %v316 = vld.sshfl [vmem:[#allocation1] sm:$0xff pattern:$0x75316420]
      %v317 = vld.sshfl [vmem:[#allocation1 + $0x8] sm:$0xff pattern:$0x75316420]
      %v320 = vpack.c.bf16 %v317, %v316
      %v321 = vld [vmem:[%s1] sm:$0xf]
      %v322 = vld [vmem:[%s1 + $0x4] sm:$0xf]
      %v323 = vld [vmem:[%s1 + $0x8] sm:$0xf]
      %v324 = vld [vmem:[%s1 + $0xc] sm:$0xf]
      %v325 = vld [vmem:[%s1 + $0x10] sm:$0xf]
      %v326 = vld [vmem:[%s1 + $0x14] sm:$0xf]
      %v327 = vld [vmem:[%s1 + $0x18] sm:$0xf]
      %v328 = vld [vmem:[%s1 + $0x1c] sm:$0xf]
      %v329 = vld [vmem:[%s2] sm:$0xff]
      %v330 = vld [vmem:[%s2 + $0x8] sm:$0xff]
      %v331 = vld [vmem:[%s2 + $0x10] sm:$0xff]
      %v332 = vld [vmem:[%s2 + $0x18] sm:$0xff]
      %v333 = vld [vmem:[%s2 + $0x20] sm:$0xff]
      %v334 = vld [vmem:[%s2 + $0x28] sm:$0xff]
      %v335 = vld [vmem:[%s2 + $0x30] sm:$0xff]
      %v336 = vld [vmem:[%s2 + $0x38] sm:$0xff]
      %v338 = vunpack.c.l.b16 %v320
      %v339 = vunpack.c.h.b16 %v320
      %v340 = vpack.c.b16 %v338, %v338
      %v341 = vpack.c.b16 %v339, %v339
      %342 = vrot.lane.b32.xlu0 %v340, 17
      %v343 = vpop.permute.xlu0 %342
      %344 = vrot.lane.b32.xlu0 %v341, 17
      %v345 = vpop.permute.xlu0 %344
      %vm346 = vcmask 138240
      %v347 = vsel %vm346, %v343, %v345
      %vm349 = vcmask 138240
      %v352 = vsel %vm349, 0, %v343
      %v355 = vsel %vm349, %v345, 0
      %v357 = vsel %vm309, 1, 0
      %v358 = vsel %vm310, 1, 0
      %vm359 = vcmp.eq.s32.totalorder %v357, 1
      %vm360 = vcmp.eq.s32.totalorder %v358, 1
      %vm361 = vmpackc.low %vm360, %vm359
      %v362 = vsel %vm361, 65537, 0
      %v363 = vperm.slane %v362, 0
      %v364 = vperm.slane %v362, 4
      %v365 = vunpack.c.l.b16 %v363
      %v366 = vunpack.c.h.b16 %v363
      %v367 = vunpack.c.l.b16 0
      %v368 = vunpack.c.h.b16 0
      %vm369 = vcmp.ne.s32.totalorder %v365, %v367
      %vm370 = vcmp.ne.s32.totalorder %v366, %v368
      %vm371 = vmpackc.low %vm370, %vm369
      %v372 = vunpack.c.l.b16 %v364
      %v373 = vunpack.c.h.b16 %v364
      %v374 = vunpack.c.l.b16 0
      %v375 = vunpack.c.h.b16 0
      %vm376 = vcmp.ne.s32.totalorder %v372, %v374
      %vm377 = vcmp.ne.s32.totalorder %v373, %v375
      %vm378 = vmpackc.low %vm377, %vm376
      %v379 = vsel %vm371, %v352, 0
      %v380 = vsel %vm378, %v347, 0
      %v381 = vsel %vm311, 1, 0
      %v382 = vsel %vm312, 1, 0
      %vm383 = vcmp.eq.s32.totalorder %v381, 1
      %vm384 = vcmp.eq.s32.totalorder %v382, 1
      %vm385 = vmpackc.low %vm384, %vm383
      %v386 = vsel %vm385, 65537, 0
      %v387 = vperm.slane %v386, 0
      %v388 = vperm.slane %v386, 4
      %389 = vrot.lane.b32.xlu0 %v387, 2
      %v390 = vpop.permute.xlu0 %389
      %391 = vrot.lane.b32.xlu0 %v388, 2
      %v392 = vpop.permute.xlu0 %391
      %vm393 = vcmask 15360
      %v394 = vsel %vm393, %v390, %v392
      %v395 = vunpack.c.l.b16 %v390
      %v396 = vunpack.c.h.b16 %v390
      %v397 = vunpack.c.l.b16 0
      %v398 = vunpack.c.h.b16 0
      %vm399 = vcmp.ne.s32.totalorder %v395, %v397
      %vm400 = vcmp.ne.s32.totalorder %v396, %v398
      %vm401 = vmpackc.low %vm400, %vm399
      %v402 = vunpack.c.l.b16 %v394
      %v403 = vunpack.c.h.b16 %v394
      %v404 = vunpack.c.l.b16 0
      %v405 = vunpack.c.h.b16 0
      %vm406 = vcmp.ne.s32.totalorder %v402, %v404
      %vm407 = vcmp.ne.s32.totalorder %v403, %v405
      %vm408 = vmpackc.low %vm407, %vm406
      %v409 = vunpack.c.l.b16 %v392
      %v410 = vunpack.c.h.b16 %v392
      %v411 = vunpack.c.l.b16 0
      %v412 = vunpack.c.h.b16 0
      %vm413 = vcmp.ne.s32.totalorder %v409, %v411
      %vm414 = vcmp.ne.s32.totalorder %v410, %v412
      %vm415 = vmpackc.low %vm414, %vm413
      %v416 = vsel %vm401, %v352, 0
      %v417 = vsel %vm408, %v347, 0
      %v418 = vsel %vm415, %v355, 0
      %419 = vrot.lane.b32.xlu0 %v363, 16
      %v420 = vpop.permute.xlu0 %419
      %421 = vrot.lane.b32.xlu0 %v364, 16
      %v422 = vpop.permute.xlu0 %421
      %vm423 = vcmask 130048
      %v424 = vsel %vm423, %v420, %v422
      %v425 = vunpack.c.l.b16 %v420
      %v426 = vunpack.c.h.b16 %v420
      %v427 = vunpack.c.l.b16 0
      %v428 = vunpack.c.h.b16 0
      %vm429 = vcmp.ne.s32.totalorder %v425, %v427
      %vm430 = vcmp.ne.s32.totalorder %v426, %v428
      %vm431 = vmpackc.low %vm430, %vm429
      %v432 = vunpack.c.l.b16 %v424
      %v433 = vunpack.c.h.b16 %v424
      %v434 = vunpack.c.l.b16 0
      %v435 = vunpack.c.h.b16 0
      %vm436 = vcmp.ne.s32.totalorder %v432, %v434
      %vm437 = vcmp.ne.s32.totalorder %v433, %v435
      %vm438 = vmpackc.low %vm437, %vm436
      %v439 = vunpack.c.l.b16 %v422
      %v440 = vunpack.c.h.b16 %v422
      %v441 = vunpack.c.l.b16 0
      %v442 = vunpack.c.h.b16 0
      %vm443 = vcmp.ne.s32.totalorder %v439, %v441
      %vm444 = vcmp.ne.s32.totalorder %v440, %v442
      %vm445 = vmpackc.low %vm444, %vm443
      %v446 = vsel %vm431, %v352, 0
      %v447 = vsel %vm438, %v347, 0
      %v448 = vsel %vm445, %v355, 0
      %449 = vrot.lane.b32.xlu0 %v387, 18
      %v450 = vpop.permute.xlu0 %449
      %451 = vrot.lane.b32.xlu0 %v388, 18
      %v452 = vpop.permute.xlu0 %451
      %vm453 = vcmask 146432
      %v454 = vsel %vm453, %v450, %v452
      %v455 = vunpack.c.l.b16 %v450
      %v456 = vunpack.c.h.b16 %v450
      %v457 = vunpack.c.l.b16 0
      %v458 = vunpack.c.h.b16 0
      %vm459 = vcmp.ne.s32.totalorder %v455, %v457
      %vm460 = vcmp.ne.s32.totalorder %v456, %v458
      %vm461 = vmpackc.low %vm460, %vm459
      %v462 = vunpack.c.l.b16 %v454
      %v463 = vunpack.c.h.b16 %v454
      %v464 = vunpack.c.l.b16 0
      %v465 = vunpack.c.h.b16 0
      %vm466 = vcmp.ne.s32.totalorder %v462, %v464
      %vm467 = vcmp.ne.s32.totalorder %v463, %v465
      %vm468 = vmpackc.low %vm467, %vm466
      %v469 = vunpack.c.l.b16 %v452
      %v470 = vunpack.c.h.b16 %v452
      %v471 = vunpack.c.l.b16 0
      %v472 = vunpack.c.h.b16 0
      %vm473 = vcmp.ne.s32.totalorder %v469, %v471
      %vm474 = vcmp.ne.s32.totalorder %v470, %v472
      %vm475 = vmpackc.low %vm474, %vm473
      %v476 = vsel %vm461, %v352, 0
      %v477 = vsel %vm468, %v347, 0
      %v478 = vsel %vm475, %v355, 0
      %479 = vrot.lane.b32.xlu0 %v363, 32
      %v480 = vpop.permute.xlu0 %479
      %481 = vrot.lane.b32.xlu0 %v364, 32
      %v482 = vpop.permute.xlu0 %481
      %vm483 = vcmask 261120
      %v484 = vsel %vm483, %v480, %v482
      %v485 = vunpack.c.l.b16 %v480
      %v486 = vunpack.c.h.b16 %v480
      %v487 = vunpack.c.l.b16 0
      %v488 = vunpack.c.h.b16 0
      %vm489 = vcmp.ne.s32.totalorder %v485, %v487
      %vm490 = vcmp.ne.s32.totalorder %v486, %v488
      %vm491 = vmpackc.low %vm490, %vm489
      %v492 = vunpack.c.l.b16 %v484
      %v493 = vunpack.c.h.b16 %v484
      %v494 = vunpack.c.l.b16 0
      %v495 = vunpack.c.h.b16 0
      %vm496 = vcmp.ne.s32.totalorder %v492, %v494
      %vm497 = vcmp.ne.s32.totalorder %v493, %v495
      %vm498 = vmpackc.low %vm497, %vm496
      %v499 = vunpack.c.l.b16 %v482
      %v500 = vunpack.c.h.b16 %v482
      %v501 = vunpack.c.l.b16 0
      %v502 = vunpack.c.h.b16 0
      %vm503 = vcmp.ne.s32.totalorder %v499, %v501
      %vm504 = vcmp.ne.s32.totalorder %v500, %v502
      %vm505 = vmpackc.low %vm504, %vm503
      %v506 = vsel %vm491, %v352, 0
      %v507 = vsel %vm498, %v347, 0
      %v508 = vsel %vm505, %v355, 0
      %509 = vrot.lane.b32.xlu0 %v387, 34
      %v510 = vpop.permute.xlu0 %509
      %511 = vrot.lane.b32.xlu0 %v388, 34
      %v512 = vpop.permute.xlu0 %511
      %vm513 = vcmask 277504
      %v514 = vsel %vm513, %v510, %v512
      %v515 = vunpack.c.l.b16 %v510
      %v516 = vunpack.c.h.b16 %v510
      %v517 = vunpack.c.l.b16 0
      %v518 = vunpack.c.h.b16 0
      %vm519 = vcmp.ne.s32.totalorder %v515, %v517
      %vm520 = vcmp.ne.s32.totalorder %v516, %v518
      %vm521 = vmpackc.low %vm520, %vm519
      %v522 = vunpack.c.l.b16 %v514
      %v523 = vunpack.c.h.b16 %v514
      %v524 = vunpack.c.l.b16 0
      %v525 = vunpack.c.h.b16 0
      %vm526 = vcmp.ne.s32.totalorder %v522, %v524
      %vm527 = vcmp.ne.s32.totalorder %v523, %v525
      %vm528 = vmpackc.low %vm527, %vm526
      %v529 = vunpack.c.l.b16 %v512
      %v530 = vunpack.c.h.b16 %v512
      %v531 = vunpack.c.l.b16 0
      %v532 = vunpack.c.h.b16 0
      %vm533 = vcmp.ne.s32.totalorder %v529, %v531
      %vm534 = vcmp.ne.s32.totalorder %v530, %v532
      %vm535 = vmpackc.low %vm534, %vm533
      %v536 = vsel %vm521, %v352, 0
      %v537 = vsel %vm528, %v347, 0
      %v538 = vsel %vm535, %v355, 0
      %v541 = vrot.slane %v352, 6
      %v542 = vrot.slane %v347, 6
      %v543 = vrot.slane %v355, 6
      %544 = vrot.lane.b32.xlu0 %v541, 127
      %v545 = vpop.permute.xlu0 %544
      %546 = vrot.lane.b32.xlu0 %v542, 127
      %v547 = vpop.permute.xlu0 %546
      %548 = vrot.lane.b32.xlu0 %v543, 127
      %v549 = vpop.permute.xlu0 %548
      %vm550 = vcmask 1039360
      %v551 = vsel %vm550, %v545, %v547
      %v552 = vsel %vm550, %v547, %v549
      %v556 = vrot.slane %v416, 4
      %v557 = vrot.slane %v417, 4
      %v558 = vrot.slane %v418, 4
      %559 = vrot.lane.b32.xlu0 %v556, 126
      %v560 = vpop.permute.xlu0 %559
      %561 = vrot.lane.b32.xlu0 %v557, 126
      %v562 = vpop.permute.xlu0 %561
      %563 = vrot.lane.b32.xlu0 %v558, 126
      %v564 = vpop.permute.xlu0 %563
      %vm565 = vcmask 1031168
      %v566 = vsel %vm565, %v560, %v562
      %v567 = vsel %vm565, %v562, %v564
      %v571 = vrot.slane %v446, 2
      %v572 = vrot.slane %v447, 2
      %v573 = vrot.slane %v448, 2
      %574 = vrot.lane.b32.xlu0 %v571, 112
      %v575 = vpop.permute.xlu0 %574
      %576 = vrot.lane.b32.xlu0 %v572, 112
      %v577 = vpop.permute.xlu0 %576
      %578 = vrot.lane.b32.xlu0 %v573, 112
      %v579 = vpop.permute.xlu0 %578
      %vm580 = vcmask 916480
      %v581 = vsel %vm580, %v575, %v577
      %v582 = vsel %vm580, %v577, %v579
      %583 = vrot.lane.b32.xlu0 %v352, 111
      %v584 = vpop.permute.xlu0 %583
      %585 = vrot.lane.b32.xlu0 %v347, 111
      %v586 = vpop.permute.xlu0 %585
      %587 = vrot.lane.b32.xlu0 %v355, 111
      %v588 = vpop.permute.xlu0 %587
      %vm589 = vcmask 908288
      %v590 = vsel %vm589, %v584, %v586
      %v591 = vsel %vm589, %v586, %v588
      %v595 = vrot.slane %v476, 6
      %v596 = vrot.slane %v477, 6
      %v597 = vrot.slane %v478, 6
      %598 = vrot.lane.b32.xlu0 %v595, 110
      %v599 = vpop.permute.xlu0 %598
      %600 = vrot.lane.b32.xlu0 %v596, 110
      %v601 = vpop.permute.xlu0 %600
      %602 = vrot.lane.b32.xlu0 %v597, 110
      %v603 = vpop.permute.xlu0 %602
      %vm604 = vcmask 900096
      %v605 = vsel %vm604, %v599, %v601
      %v606 = vsel %vm604, %v601, %v603
      %v610 = vrot.slane %v506, 4
      %v611 = vrot.slane %v507, 4
      %v612 = vrot.slane %v508, 4
      %613 = vrot.lane.b32.xlu0 %v610, 96
      %v614 = vpop.permute.xlu0 %613
      %615 = vrot.lane.b32.xlu0 %v611, 96
      %v616 = vpop.permute.xlu0 %615
      %617 = vrot.lane.b32.xlu0 %v612, 96
      %v618 = vpop.permute.xlu0 %617
      %vm619 = vcmask 785408
      %v620 = vsel %vm619, %v614, %v616
      %v621 = vsel %vm619, %v616, %v618
      %v622 = vrot.slane %v352, 2
      %v623 = vrot.slane %v347, 2
      %v624 = vrot.slane %v355, 2
      %625 = vrot.lane.b32.xlu0 %v622, 95
      %v626 = vpop.permute.xlu0 %625
      %627 = vrot.lane.b32.xlu0 %v623, 95
      %v628 = vpop.permute.xlu0 %627
      %629 = vrot.lane.b32.xlu0 %v624, 95
      %v630 = vpop.permute.xlu0 %629
      %vm631 = vcmask 777216
      %v632 = vsel %vm631, %v626, %v628
      %v633 = vsel %vm631, %v628, %v630
      %637 = vrot.lane.b32.xlu0 %v536, 94
      %v638 = vpop.permute.xlu0 %637
      %639 = vrot.lane.b32.xlu0 %v537, 94
      %v640 = vpop.permute.xlu0 %639
      %641 = vrot.lane.b32.xlu0 %v538, 94
      %v642 = vpop.permute.xlu0 %641
      %vm643 = vcmask 769024
      %v644 = vsel %vm643, %v638, %v640
      %v645 = vsel %vm643, %v640, %v642
      %vm646 = vcmask 1041408
      %v649 = vsel %vm646, %v379, %v551
      %v652 = vsel %vm646, %v380, %v552
      %vm653 = vcmask 1043456
      %v655 = vsel %vm653, %v649, %v566
      %v657 = vsel %vm653, %v652, %v567
      %vm658 = vcmask 1045504
      %v660 = vsel %vm658, %v655, %v581
      %v663 = vsel %vm658, %v657, %v582
      %v667 = vsel %vm646, %v590, %v605
      %v670 = vsel %vm646, %v591, %v606
      %v672 = vsel %vm653, %v667, %v620
      %v674 = vsel %vm653, %v670, %v621
      %v676 = vsel %vm658, %v672, %v632
      %v679 = vsel %vm658, %v674, %v633
      %682 = vset.pattern.permute.xlu0 0
      %683 = vperm.xlu0 %682, %v329
      %v684 = vpop.permute.xlu0 %683
      %687 = vset.pattern.permute.xlu0 0
      %688 = vperm.xlu0 %687, %v330
      %v689 = vpop.permute.xlu0 %688
      %692 = vset.pattern.permute.xlu0 0
      %693 = vperm.xlu0 %692, %v331
      %v694 = vpop.permute.xlu0 %693
      %697 = vset.pattern.permute.xlu0 0
      %698 = vperm.xlu0 %697, %v332
      %v699 = vpop.permute.xlu0 %698
      %702 = vset.pattern.permute.xlu0 0
      %703 = vperm.xlu0 %702, %v333
      %v704 = vpop.permute.xlu0 %703
      %707 = vset.pattern.permute.xlu0 0
      %708 = vperm.xlu0 %707, %v334
      %v709 = vpop.permute.xlu0 %708
      %712 = vset.pattern.permute.xlu0 0
      %713 = vperm.xlu0 %712, %v335
      %v714 = vpop.permute.xlu0 %713
      %717 = vset.pattern.permute.xlu0 0
      %718 = vperm.xlu0 %717, %v336
      %v719 = vpop.permute.xlu0 %718
      %v729 = vunpack.c.l.b16 %v321
      %v730 = vunpack.c.l.b16 %v322
      %v731 = vunpack.c.l.b16 %v323
      %v732 = vunpack.c.l.b16 %v324
      %v733 = vunpack.c.l.b16 %v325
      %v734 = vunpack.c.l.b16 %v326
      %v735 = vunpack.c.l.b16 %v327
      %v736 = vunpack.c.l.b16 %v328
      %v737 = vpack.c.b16 %v730, %v729
      %v738 = vpack.c.b16 %v732, %v731
      %v739 = vpack.c.b16 %v734, %v733
      %v740 = vpack.c.b16 %v736, %v735
      %vm741 = vcmask 293888
      %v743 = vsel %vm741, %v737, 0
      %v746 = vsel %vm741, %v738, 0
      %v749 = vsel %vm741, %v739, 0
      %v752 = vsel %vm741, %v740, 0
      %v755 = vsel %vm646, %v644, 0
      %v758 = vsel %vm646, %v645, 0
      %760 = vmatpush.bf16.msra.mxu0 0
      %761 = vmatpush.bf16.msra.mxu0 0
      %762 = vmatpush.bf16.msra.mxu0 0
      %763 = vmatpush.bf16.msra.mxu0 0
      %764 = vmatpush.bf16.msra.mxu0 0
      %765 = vmatpush.bf16.msra.mxu0 %v755
      %766 = vmatpush.bf16.msra.mxu0 %v676
      %767 = vmatpush.bf16.msra.mxu0 %v660
      %768 = vmatmul.bf16.gmra.mxu0 %v743
      %v769 = vpop.f32.mrf.mxu0
      %v770 = vadd.f32 %v684, %v769
      %v771 = vpop.f32.mrf.mxu0
      %v772 = vadd.f32 %v689, %v771
      %773 = vmatmul.bf16.gmra.mxu0 %v746
      %v774 = vpop.f32.mrf.mxu0
      %v775 = vadd.f32 %v694, %v774
      %v776 = vpop.f32.mrf.mxu0
      %v777 = vadd.f32 %v699, %v776
      %778 = vmatmul.bf16.gmra.mxu0 %v749
      %v779 = vpop.f32.mrf.mxu0
      %v780 = vadd.f32 %v704, %v779
      %v781 = vpop.f32.mrf.mxu0
      %v782 = vadd.f32 %v709, %v781
      %783 = vmatmul.bf16.gmra.mxu0 %v752
      %v784 = vpop.f32.mrf.mxu0
      %v785 = vadd.f32 %v714, %v784
      %v786 = vpop.f32.mrf.mxu0
      %v787 = vadd.f32 %v719, %v786
      %788 = vdwg.mxu0
      %789 = vmatpush.bf16.msra.mxu0 0
      %790 = vmatpush.bf16.msra.mxu0 0
      %791 = vmatpush.bf16.msra.mxu0 0
      %792 = vmatpush.bf16.msra.mxu0 0
      %793 = vmatpush.bf16.msra.mxu0 0
      %794 = vmatpush.bf16.msra.mxu0 %v758
      %795 = vmatpush.bf16.msra.mxu0 %v679
      %796 = vmatpush.bf16.msra.mxu0 %v663
      %797 = vmatmul.bf16.gmra.mxu0 %v743
      %v798 = vpop.f32.mrf.mxu0
      %v799 = vadd.f32 %v684, %v798
      %v800 = vpop.f32.mrf.mxu0
      %v801 = vadd.f32 %v689, %v800
      %802 = vmatmul.bf16.gmra.mxu0 %v746
      %v803 = vpop.f32.mrf.mxu0
      %v804 = vadd.f32 %v694, %v803
      %v805 = vpop.f32.mrf.mxu0
      %v806 = vadd.f32 %v699, %v805
      %807 = vmatmul.bf16.gmra.mxu0 %v749
      %v808 = vpop.f32.mrf.mxu0
      %v809 = vadd.f32 %v704, %v808
      %v810 = vpop.f32.mrf.mxu0
      %v811 = vadd.f32 %v709, %v810
      %812 = vmatmul.bf16.gmra.mxu0 %v752
      %v813 = vpop.f32.mrf.mxu0
      %v814 = vadd.f32 %v714, %v813
      %v815 = vpop.f32.mrf.mxu0
      %v816 = vadd.f32 %v719, %v815
      %817 = vdwg.mxu0
      %v818 = vmax.f32 %v770, 0.0
      %v819 = vmax.f32 %v799, 0.0
      %v820 = vmax.f32 %v772, 0.0
      %v821 = vmax.f32 %v801, 0.0
      %v822 = vmax.f32 %v775, 0.0
      %v823 = vmax.f32 %v804, 0.0
      %v824 = vmax.f32 %v777, 0.0
      %v825 = vmax.f32 %v806, 0.0
      %v826 = vmax.f32 %v780, 0.0
      %v827 = vmax.f32 %v809, 0.0
      %v828 = vmax.f32 %v782, 0.0
      %v829 = vmax.f32 %v811, 0.0
      %v830 = vmax.f32 %v785, 0.0
      %v831 = vmax.f32 %v814, 0.0
      %v832 = vmax.f32 %v787, 0.0
      %v833 = vmax.f32 %v816, 0.0
      %v834 = vpack.c.bf16 %v819, %v818
      %v835 = vpack.c.bf16 %v821, %v820
      %v836 = vpack.c.bf16 %v823, %v822
      %v837 = vpack.c.bf16 %v825, %v824
      %v838 = vpack.c.bf16 %v827, %v826
      %v839 = vpack.c.bf16 %v829, %v828
      %v840 = vpack.c.bf16 %v831, %v830
      %v841 = vpack.c.bf16 %v833, %v832
      %v842 = vld [vmem:[%s3] sm:$0xff]
      %v843 = vld [vmem:[%s3 + $0x8] sm:$0xff]
      %v844 = vld [vmem:[%s3 + $0x10] sm:$0xf]
      %v845 = vld [vmem:[%s3 + $0x14] sm:$0xff]
      %v846 = vld [vmem:[%s3 + $0x1c] sm:$0xff]
      %v847 = vld [vmem:[%s3 + $0x24] sm:$0xf]
      %v848 = vld [vmem:[%s3 + $0x28] sm:$0xff]
      %v849 = vld [vmem:[%s3 + $0x30] sm:$0xff]
      %v850 = vld [vmem:[%s3 + $0x38] sm:$0xf]
      %v851 = vld [vmem:[%s3 + $0x3c] sm:$0xff]
      %v852 = vld [vmem:[%s3 + $0x44] sm:$0xff]
      %v853 = vld [vmem:[%s3 + $0x4c] sm:$0xf]
      %v854 = vld [vmem:[%s3 + $0x50] sm:$0xff]
      %v855 = vld [vmem:[%s3 + $0x58] sm:$0xff]
      %v856 = vld [vmem:[%s3 + $0x60] sm:$0xf]
      %v857 = vld [vmem:[%s3 + $0x64] sm:$0xff]
      %v858 = vld [vmem:[%s3 + $0x6c] sm:$0xff]
      %v859 = vld [vmem:[%s3 + $0x74] sm:$0xf]
      %v860 = vld [vmem:[%s3 + $0x78] sm:$0xff]
      %v861 = vld [vmem:[%s3 + $0x80] sm:$0xff]
      %v862 = vld [vmem:[%s3 + $0x88] sm:$0xf]
      %v863 = vld [vmem:[%s3 + $0x8c] sm:$0xff]
      %v864 = vld [vmem:[%s3 + $0x94] sm:$0xff]
      %v865 = vld [vmem:[%s3 + $0x9c] sm:$0xf]
      %v866 = vld [vmem:[%s4] sm:$0xff]
      %v867 = vld [vmem:[%s4 + $0x8] sm:$0xff]
      %v868 = vld [vmem:[%s4 + $0x10] sm:$0xff]
      %v869 = vld [vmem:[%s4 + $0x18] sm:$0xff]
      %v870 = vld [vmem:[%s4 + $0x20] sm:$0xff]
      %v871 = vld [vmem:[%s4 + $0x28] sm:$0xff]
      %v872 = vld [vmem:[%s4 + $0x30] sm:$0xff]
      %v873 = vld [vmem:[%s4 + $0x38] sm:$0xff]
      %v882 = vunpack.c.l.b16 %v834
      %v883 = vunpack.c.h.b16 %v834
      %v884 = vunpack.c.l.b16 %v835
      %v885 = vunpack.c.h.b16 %v835
      %v886 = vunpack.c.l.b16 %v836
      %v887 = vunpack.c.h.b16 %v836
      %v888 = vunpack.c.l.b16 %v837
      %v889 = vunpack.c.h.b16 %v837
      %v890 = vunpack.c.l.b16 %v838
      %v891 = vunpack.c.h.b16 %v838
      %v892 = vunpack.c.l.b16 %v839
      %v893 = vunpack.c.h.b16 %v839
      %v894 = vunpack.c.l.b16 %v840
      %v895 = vunpack.c.h.b16 %v840
      %v896 = vunpack.c.l.b16 %v841
      %v897 = vunpack.c.h.b16 %v841
      %v898 = vpack.c.b16 %v884, %v882
      %v899 = vpack.c.b16 %v885, %v883
      %v900 = vpack.c.b16 %v888, %v886
      %v901 = vpack.c.b16 %v889, %v887
      %v902 = vpack.c.b16 %v892, %v890
      %v903 = vpack.c.b16 %v893, %v891
      %v904 = vpack.c.b16 %v896, %v894
      %v905 = vpack.c.b16 %v897, %v895
      %906 = vrot.lane.b32.xlu0 %v898, 17
      %v907 = vpop.permute.xlu0 %906
      %908 = vrot.lane.b32.xlu0 %v899, 17
      %v909 = vpop.permute.xlu0 %908
      %910 = vrot.lane.b32.xlu0 %v900, 17
      %v911 = vpop.permute.xlu0 %910
      %912 = vrot.lane.b32.xlu0 %v901, 17
      %v913 = vpop.permute.xlu0 %912
      %914 = vrot.lane.b32.xlu0 %v902, 17
      %v915 = vpop.permute.xlu0 %914
      %916 = vrot.lane.b32.xlu0 %v903, 17
      %v917 = vpop.permute.xlu0 %916
      %918 = vrot.lane.b32.xlu0 %v904, 17
      %v919 = vpop.permute.xlu0 %918
      %920 = vrot.lane.b32.xlu0 %v905, 17
      %v921 = vpop.permute.xlu0 %920
      %v922 = vsel %vm346, %v907, %v909
      %v923 = vsel %vm346, %v911, %v913
      %v924 = vsel %vm346, %v915, %v917
      %v925 = vsel %vm346, %v919, %v921
      %v931 = vsel %vm349, 0, %v907
      %v934 = vsel %vm349, 0, %v911
      %v937 = vsel %vm349, 0, %v915
      %v940 = vsel %vm349, 0, %v919
      %v943 = vsel %vm349, %v909, 0
      %v946 = vsel %vm349, %v913, 0
      %v949 = vsel %vm349, %v917, 0
      %v952 = vsel %vm349, %v921, 0
      %v954 = vsel %vm371, %v931, 0
      %v955 = vsel %vm378, %v922, 0
      %v956 = vsel %vm371, %v934, 0
      %v957 = vsel %vm378, %v923, 0
      %v958 = vsel %vm371, %v937, 0
      %v959 = vsel %vm378, %v924, 0
      %v960 = vsel %vm371, %v940, 0
      %v961 = vsel %vm378, %v925, 0
      %v962 = vsel %vm401, %v931, 0
      %v963 = vsel %vm408, %v922, 0
      %v964 = vsel %vm415, %v943, 0
      %v965 = vsel %vm401, %v934, 0
      %v966 = vsel %vm408, %v923, 0
      %v967 = vsel %vm415, %v946, 0
      %v968 = vsel %vm401, %v937, 0
      %v969 = vsel %vm408, %v924, 0
      %v970 = vsel %vm415, %v949, 0
      %v971 = vsel %vm401, %v940, 0
      %v972 = vsel %vm408, %v925, 0
      %v973 = vsel %vm415, %v952, 0
      %v974 = vsel %vm431, %v931, 0
      %v975 = vsel %vm438, %v922, 0
      %v976 = vsel %vm445, %v943, 0
      %v977 = vsel %vm431, %v934, 0
      %v978 = vsel %vm438, %v923, 0
      %v979 = vsel %vm445, %v946, 0
      %v980 = vsel %vm431, %v937, 0
      %v981 = vsel %vm438, %v924, 0
      %v982 = vsel %vm445, %v949, 0
      %v983 = vsel %vm431, %v940, 0
      %v984 = vsel %vm438, %v925, 0
      %v985 = vsel %vm445, %v952, 0
      %v986 = vsel %vm461, %v931, 0
      %v987 = vsel %vm468, %v922, 0
      %v988 = vsel %vm475, %v943, 0
      %v989 = vsel %vm461, %v934, 0
      %v990 = vsel %vm468, %v923, 0
      %v991 = vsel %vm475, %v946, 0
      %v992 = vsel %vm461, %v937, 0
      %v993 = vsel %vm468, %v924, 0
      %v994 = vsel %vm475, %v949, 0
      %v995 = vsel %vm461, %v940, 0
      %v996 = vsel %vm468, %v925, 0
      %v997 = vsel %vm475, %v952, 0
      %v998 = vsel %vm491, %v931, 0
      %v999 = vsel %vm498, %v922, 0
      %v1000 = vsel %vm505, %v943, 0
      %v1001 = vsel %vm491, %v934, 0
      %v1002 = vsel %vm498, %v923, 0
      %v1003 = vsel %vm505, %v946, 0
      %v1004 = vsel %vm491, %v937, 0
      %v1005 = vsel %vm498, %v924, 0
      %v1006 = vsel %vm505, %v949, 0
      %v1007 = vsel %vm491, %v940, 0
      %v1008 = vsel %vm498, %v925, 0
      %v1009 = vsel %vm505, %v952, 0
      %v1010 = vsel %vm521, %v931, 0
      %v1011 = vsel %vm528, %v922, 0
      %v1012 = vsel %vm535, %v943, 0
      %v1013 = vsel %vm521, %v934, 0
      %v1014 = vsel %vm528, %v923, 0
      %v1015 = vsel %vm535, %v946, 0
      %v1016 = vsel %vm521, %v937, 0
      %v1017 = vsel %vm528, %v924, 0
      %v1018 = vsel %vm535, %v949, 0
      %v1019 = vsel %vm521, %v940, 0
      %v1020 = vsel %vm528, %v925, 0
      %v1021 = vsel %vm535, %v952, 0
      %1030 = vrot.lane.b32.xlu0 %v931, 127
      %v1031 = vpop.permute.xlu0 %1030
      %1032 = vrot.lane.b32.xlu0 %v922, 127
      %v1033 = vpop.permute.xlu0 %1032
      %1034 = vrot.lane.b32.xlu0 %v943, 127
      %v1035 = vpop.permute.xlu0 %1034
      %1036 = vrot.lane.b32.xlu0 %v934, 127
      %v1037 = vpop.permute.xlu0 %1036
      %1038 = vrot.lane.b32.xlu0 %v923, 127
      %v1039 = vpop.permute.xlu0 %1038
      %1040 = vrot.lane.b32.xlu0 %v946, 127
      %v1041 = vpop.permute.xlu0 %1040
      %1042 = vrot.lane.b32.xlu0 %v937, 127
      %v1043 = vpop.permute.xlu0 %1042
      %1044 = vrot.lane.b32.xlu0 %v924, 127
      %v1045 = vpop.permute.xlu0 %1044
      %1046 = vrot.lane.b32.xlu0 %v949, 127
      %v1047 = vpop.permute.xlu0 %1046
      %1048 = vrot.lane.b32.xlu0 %v940, 127
      %v1049 = vpop.permute.xlu0 %1048
      %1050 = vrot.lane.b32.xlu0 %v925, 127
      %v1051 = vpop.permute.xlu0 %1050
      %1052 = vrot.lane.b32.xlu0 %v952, 127
      %v1053 = vpop.permute.xlu0 %1052
      %v1054 = vsel %vm550, %v1031, %v1033
      %v1055 = vsel %vm550, %v1033, %v1035
      %v1056 = vsel %vm550, %v1037, %v1039
      %v1057 = vsel %vm550, %v1039, %v1041
      %v1058 = vsel %vm550, %v1043, %v1045
      %v1059 = vsel %vm550, %v1045, %v1047
      %v1060 = vsel %vm550, %v1049, %v1051
      %v1061 = vsel %vm550, %v1051, %v1053
      %1082 = vrot.lane.b32.xlu0 %v962, 126
      %v1083 = vpop.permute.xlu0 %1082
      %1084 = vrot.lane.b32.xlu0 %v963, 126
      %v1085 = vpop.permute.xlu0 %1084
      %1086 = vrot.lane.b32.xlu0 %v964, 126
      %v1087 = vpop.permute.xlu0 %1086
      %1088 = vrot.lane.b32.xlu0 %v965, 126
      %v1089 = vpop.permute.xlu0 %1088
      %1090 = vrot.lane.b32.xlu0 %v966, 126
      %v1091 = vpop.permute.xlu0 %1090
      %1092 = vrot.lane.b32.xlu0 %v967, 126
      %v1093 = vpop.permute.xlu0 %1092
      %1094 = vrot.lane.b32.xlu0 %v968, 126
      %v1095 = vpop.permute.xlu0 %1094
      %1096 = vrot.lane.b32.xlu0 %v969, 126
      %v1097 = vpop.permute.xlu0 %1096
      %1098 = vrot.lane.b32.xlu0 %v970, 126
      %v1099 = vpop.permute.xlu0 %1098
      %1100 = vrot.lane.b32.xlu0 %v971, 126
      %v1101 = vpop.permute.xlu0 %1100
      %1102 = vrot.lane.b32.xlu0 %v972, 126
      %v1103 = vpop.permute.xlu0 %1102
      %1104 = vrot.lane.b32.xlu0 %v973, 126
      %v1105 = vpop.permute.xlu0 %1104
      %v1106 = vsel %vm565, %v1083, %v1085
      %v1107 = vsel %vm565, %v1085, %v1087
      %v1108 = vsel %vm565, %v1089, %v1091
      %v1109 = vsel %vm565, %v1091, %v1093
      %v1110 = vsel %vm565, %v1095, %v1097
      %v1111 = vsel %vm565, %v1097, %v1099
      %v1112 = vsel %vm565, %v1101, %v1103
      %v1113 = vsel %vm565, %v1103, %v1105
      %1134 = vrot.lane.b32.xlu0 %v974, 112
      %v1135 = vpop.permute.xlu0 %1134
      %1136 = vrot.lane.b32.xlu0 %v975, 112
      %v1137 = vpop.permute.xlu0 %1136
      %1138 = vrot.lane.b32.xlu0 %v976, 112
      %v1139 = vpop.permute.xlu0 %1138
      %1140 = vrot.lane.b32.xlu0 %v977, 112
      %v1141 = vpop.permute.xlu0 %1140
      %1142 = vrot.lane.b32.xlu0 %v978, 112
      %v1143 = vpop.permute.xlu0 %1142
      %1144 = vrot.lane.b32.xlu0 %v979, 112
      %v1145 = vpop.permute.xlu0 %1144
      %1146 = vrot.lane.b32.xlu0 %v980, 112
      %v1147 = vpop.permute.xlu0 %1146
      %1148 = vrot.lane.b32.xlu0 %v981, 112
      %v1149 = vpop.permute.xlu0 %1148
      %1150 = vrot.lane.b32.xlu0 %v982, 112
      %v1151 = vpop.permute.xlu0 %1150
      %1152 = vrot.lane.b32.xlu0 %v983, 112
      %v1153 = vpop.permute.xlu0 %1152
      %1154 = vrot.lane.b32.xlu0 %v984, 112
      %v1155 = vpop.permute.xlu0 %1154
      %1156 = vrot.lane.b32.xlu0 %v985, 112
      %v1157 = vpop.permute.xlu0 %1156
      %v1158 = vsel %vm580, %v1135, %v1137
      %v1159 = vsel %vm580, %v1137, %v1139
      %v1160 = vsel %vm580, %v1141, %v1143
      %v1161 = vsel %vm580, %v1143, %v1145
      %v1162 = vsel %vm580, %v1147, %v1149
      %v1163 = vsel %vm580, %v1149, %v1151
      %v1164 = vsel %vm580, %v1153, %v1155
      %v1165 = vsel %vm580, %v1155, %v1157
      %1174 = vrot.lane.b32.xlu0 %v931, 111
      %v1175 = vpop.permute.xlu0 %1174
      %1176 = vrot.lane.b32.xlu0 %v922, 111
      %v1177 = vpop.permute.xlu0 %1176
      %1178 = vrot.lane.b32.xlu0 %v943, 111
      %v1179 = vpop.permute.xlu0 %1178
      %1180 = vrot.lane.b32.xlu0 %v934, 111
      %v1181 = vpop.permute.xlu0 %1180
      %1182 = vrot.lane.b32.xlu0 %v923, 111
      %v1183 = vpop.permute.xlu0 %1182
      %1184 = vrot.lane.b32.xlu0 %v946, 111
      %v1185 = vpop.permute.xlu0 %1184
      %1186 = vrot.lane.b32.xlu0 %v937, 111
      %v1187 = vpop.permute.xlu0 %1186
      %1188 = vrot.lane.b32.xlu0 %v924, 111
      %v1189 = vpop.permute.xlu0 %1188
      %1190 = vrot.lane.b32.xlu0 %v949, 111
      %v1191 = vpop.permute.xlu0 %1190
      %1192 = vrot.lane.b32.xlu0 %v940, 111
      %v1193 = vpop.permute.xlu0 %1192
      %1194 = vrot.lane.b32.xlu0 %v925, 111
      %v1195 = vpop.permute.xlu0 %1194
      %1196 = vrot.lane.b32.xlu0 %v952, 111
      %v1197 = vpop.permute.xlu0 %1196
      %v1198 = vsel %vm589, %v1175, %v1177
      %v1199 = vsel %vm589, %v1177, %v1179
      %v1200 = vsel %vm589, %v1181, %v1183
      %v1201 = vsel %vm589, %v1183, %v1185
      %v1202 = vsel %vm589, %v1187, %v1189
      %v1203 = vsel %vm589, %v1189, %v1191
      %v1204 = vsel %vm589, %v1193, %v1195
      %v1205 = vsel %vm589, %v1195, %v1197
      %1226 = vrot.lane.b32.xlu0 %v986, 110
      %v1227 = vpop.permute.xlu0 %1226
      %1228 = vrot.lane.b32.xlu0 %v987, 110
      %v1229 = vpop.permute.xlu0 %1228
      %1230 = vrot.lane.b32.xlu0 %v988, 110
      %v1231 = vpop.permute.xlu0 %1230
      %1232 = vrot.lane.b32.xlu0 %v989, 110
      %v1233 = vpop.permute.xlu0 %1232
      %1234 = vrot.lane.b32.xlu0 %v990, 110
      %v1235 = vpop.permute.xlu0 %1234
      %1236 = vrot.lane.b32.xlu0 %v991, 110
      %v1237 = vpop.permute.xlu0 %1236
      %1238 = vrot.lane.b32.xlu0 %v992, 110
      %v1239 = vpop.permute.xlu0 %1238
      %1240 = vrot.lane.b32.xlu0 %v993, 110
      %v1241 = vpop.permute.xlu0 %1240
      %1242 = vrot.lane.b32.xlu0 %v994, 110
      %v1243 = vpop.permute.xlu0 %1242
      %1244 = vrot.lane.b32.xlu0 %v995, 110
      %v1245 = vpop.permute.xlu0 %1244
      %1246 = vrot.lane.b32.xlu0 %v996, 110
      %v1247 = vpop.permute.xlu0 %1246
      %1248 = vrot.lane.b32.xlu0 %v997, 110
      %v1249 = vpop.permute.xlu0 %1248
      %v1250 = vsel %vm604, %v1227, %v1229
      %v1251 = vsel %vm604, %v1229, %v1231
      %v1252 = vsel %vm604, %v1233, %v1235
      %v1253 = vsel %vm604, %v1235, %v1237
      %v1254 = vsel %vm604, %v1239, %v1241
      %v1255 = vsel %vm604, %v1241, %v1243
      %v1256 = vsel %vm604, %v1245, %v1247
      %v1257 = vsel %vm604, %v1247, %v1249
      %1278 = vrot.lane.b32.xlu0 %v998, 96
      %v1279 = vpop.permute.xlu0 %1278
      %1280 = vrot.lane.b32.xlu0 %v999, 96
      %v1281 = vpop.permute.xlu0 %1280
      %1282 = vrot.lane.b32.xlu0 %v1000, 96
      %v1283 = vpop.permute.xlu0 %1282
      %1284 = vrot.lane.b32.xlu0 %v1001, 96
      %v1285 = vpop.permute.xlu0 %1284
      %1286 = vrot.lane.b32.xlu0 %v1002, 96
      %v1287 = vpop.permute.xlu0 %1286
      %1288 = vrot.lane.b32.xlu0 %v1003, 96
      %v1289 = vpop.permute.xlu0 %1288
      %1290 = vrot.lane.b32.xlu0 %v1004, 96
      %v1291 = vpop.permute.xlu0 %1290
      %1292 = vrot.lane.b32.xlu0 %v1005, 96
      %v1293 = vpop.permute.xlu0 %1292
      %1294 = vrot.lane.b32.xlu0 %v1006, 96
      %v1295 = vpop.permute.xlu0 %1294
      %1296 = vrot.lane.b32.xlu0 %v1007, 96
      %v1297 = vpop.permute.xlu0 %1296
      %1298 = vrot.lane.b32.xlu0 %v1008, 96
      %v1299 = vpop.permute.xlu0 %1298
      %1300 = vrot.lane.b32.xlu0 %v1009, 96
      %v1301 = vpop.permute.xlu0 %1300
      %v1302 = vsel %vm619, %v1279, %v1281
      %v1303 = vsel %vm619, %v1281, %v1283
      %v1304 = vsel %vm619, %v1285, %v1287
      %v1305 = vsel %vm619, %v1287, %v1289
      %v1306 = vsel %vm619, %v1291, %v1293
      %v1307 = vsel %vm619, %v1293, %v1295
      %v1308 = vsel %vm619, %v1297, %v1299
      %v1309 = vsel %vm619, %v1299, %v1301
      %1318 = vrot.lane.b32.xlu0 %v931, 95
      %v1319 = vpop.permute.xlu0 %1318
      %1320 = vrot.lane.b32.xlu0 %v922, 95
      %v1321 = vpop.permute.xlu0 %1320
      %1322 = vrot.lane.b32.xlu0 %v943, 95
      %v1323 = vpop.permute.xlu0 %1322
      %1324 = vrot.lane.b32.xlu0 %v934, 95
      %v1325 = vpop.permute.xlu0 %1324
      %1326 = vrot.lane.b32.xlu0 %v923, 95
      %v1327 = vpop.permute.xlu0 %1326
      %1328 = vrot.lane.b32.xlu0 %v946, 95
      %v1329 = vpop.permute.xlu0 %1328
      %1330 = vrot.lane.b32.xlu0 %v937, 95
      %v1331 = vpop.permute.xlu0 %1330
      %1332 = vrot.lane.b32.xlu0 %v924, 95
      %v1333 = vpop.permute.xlu0 %1332
      %1334 = vrot.lane.b32.xlu0 %v949, 95
      %v1335 = vpop.permute.xlu0 %1334
      %1336 = vrot.lane.b32.xlu0 %v940, 95
      %v1337 = vpop.permute.xlu0 %1336
      %1338 = vrot.lane.b32.xlu0 %v925, 95
      %v1339 = vpop.permute.xlu0 %1338
      %1340 = vrot.lane.b32.xlu0 %v952, 95
      %v1341 = vpop.permute.xlu0 %1340
      %v1342 = vsel %vm631, %v1319, %v1321
      %v1343 = vsel %vm631, %v1321, %v1323
      %v1344 = vsel %vm631, %v1325, %v1327
      %v1345 = vsel %vm631, %v1327, %v1329
      %v1346 = vsel %vm631, %v1331, %v1333
      %v1347 = vsel %vm631, %v1333, %v1335
      %v1348 = vsel %vm631, %v1337, %v1339
      %v1349 = vsel %vm631, %v1339, %v1341
      %1370 = vrot.lane.b32.xlu0 %v1010, 94
      %v1371 = vpop.permute.xlu0 %1370
      %1372 = vrot.lane.b32.xlu0 %v1011, 94
      %v1373 = vpop.permute.xlu0 %1372
      %1374 = vrot.lane.b32.xlu0 %v1012, 94
      %v1375 = vpop.permute.xlu0 %1374
      %1376 = vrot.lane.b32.xlu0 %v1013, 94
      %v1377 = vpop.permute.xlu0 %1376
      %1378 = vrot.lane.b32.xlu0 %v1014, 94
      %v1379 = vpop.permute.xlu0 %1378
      %1380 = vrot.lane.b32.xlu0 %v1015, 94
      %v1381 = vpop.permute.xlu0 %1380
      %1382 = vrot.lane.b32.xlu0 %v1016, 94
      %v1383 = vpop.permute.xlu0 %1382
      %1384 = vrot.lane.b32.xlu0 %v1017, 94
      %v1385 = vpop.permute.xlu0 %1384
      %1386 = vrot.lane.b32.xlu0 %v1018, 94
      %v1387 = vpop.permute.xlu0 %1386
      %1388 = vrot.lane.b32.xlu0 %v1019, 94
      %v1389 = vpop.permute.xlu0 %1388
      %1390 = vrot.lane.b32.xlu0 %v1020, 94
      %v1391 = vpop.permute.xlu0 %1390
      %1392 = vrot.lane.b32.xlu0 %v1021, 94
      %v1393 = vpop.permute.xlu0 %1392
      %v1394 = vsel %vm643, %v1371, %v1373
      %v1395 = vsel %vm643, %v1373, %v1375
      %v1396 = vsel %vm643, %v1377, %v1379
      %v1397 = vsel %vm643, %v1379, %v1381
      %v1398 = vsel %vm643, %v1383, %v1385
      %v1399 = vsel %vm643, %v1385, %v1387
      %v1400 = vsel %vm643, %v1389, %v1391
      %v1401 = vsel %vm643, %v1391, %v1393
      %1411 = vset.pattern.permute.xlu0 0
      %1412 = vperm.xlu0 %1411, %v866
      %v1413 = vpop.permute.xlu0 %1412
      %1416 = vset.pattern.permute.xlu0 0
      %1417 = vperm.xlu0 %1416, %v867
      %v1418 = vpop.permute.xlu0 %1417
      %1421 = vset.pattern.permute.xlu0 0
      %1422 = vperm.xlu0 %1421, %v868
      %v1423 = vpop.permute.xlu0 %1422
      %1426 = vset.pattern.permute.xlu0 0
      %1427 = vperm.xlu0 %1426, %v869
      %v1428 = vpop.permute.xlu0 %1427
      %1431 = vset.pattern.permute.xlu0 0
      %1432 = vperm.xlu0 %1431, %v870
      %v1433 = vpop.permute.xlu0 %1432
      %1436 = vset.pattern.permute.xlu0 0
      %1437 = vperm.xlu0 %1436, %v871
      %v1438 = vpop.permute.xlu0 %1437
      %1441 = vset.pattern.permute.xlu0 0
      %1442 = vperm.xlu0 %1441, %v872
      %v1443 = vpop.permute.xlu0 %1442
      %1446 = vset.pattern.permute.xlu0 0
      %1447 = vperm.xlu0 %1446, %v873
      %v1448 = vpop.permute.xlu0 %1447
      %v1474 = vunpack.c.l.b16 %v842
      %v1475 = vunpack.c.h.b16 %v842
      %v1476 = vunpack.c.l.b16 %v843
      %v1477 = vunpack.c.h.b16 %v843
      %v1478 = vunpack.c.l.b16 %v844
      %v1479 = vunpack.c.l.b16 %v845
      %v1480 = vunpack.c.h.b16 %v845
      %v1481 = vunpack.c.l.b16 %v846
      %v1482 = vunpack.c.h.b16 %v846
      %v1483 = vunpack.c.l.b16 %v847
      %v1484 = vunpack.c.l.b16 %v848
      %v1485 = vunpack.c.h.b16 %v848
      %v1486 = vunpack.c.l.b16 %v849
      %v1487 = vunpack.c.h.b16 %v849
      %v1488 = vunpack.c.l.b16 %v850
      %v1489 = vunpack.c.l.b16 %v851
      %v1490 = vunpack.c.h.b16 %v851
      %v1491 = vunpack.c.l.b16 %v852
      %v1492 = vunpack.c.h.b16 %v852
      %v1493 = vunpack.c.l.b16 %v853
      %v1494 = vunpack.c.l.b16 %v854
      %v1495 = vunpack.c.h.b16 %v854
      %v1496 = vunpack.c.l.b16 %v855
      %v1497 = vunpack.c.h.b16 %v855
      %v1498 = vunpack.c.l.b16 %v856
      %v1499 = vunpack.c.l.b16 %v857
      %v1500 = vunpack.c.h.b16 %v857
      %v1501 = vunpack.c.l.b16 %v858
      %v1502 = vunpack.c.h.b16 %v858
      %v1503 = vunpack.c.l.b16 %v859
      %v1504 = vunpack.c.l.b16 %v860
      %v1505 = vunpack.c.h.b16 %v860
      %v1506 = vunpack.c.l.b16 %v861
      %v1507 = vunpack.c.h.b16 %v861
      %v1508 = vunpack.c.l.b16 %v862
      %v1509 = vunpack.c.l.b16 %v863
      %v1510 = vunpack.c.h.b16 %v863
      %v1511 = vunpack.c.l.b16 %v864
      %v1512 = vunpack.c.h.b16 %v864
      %v1513 = vunpack.c.l.b16 %v865
      %v1514 = vpack.c.b16 %v1479, %v1474
      %v1515 = vpack.c.b16 %v1480, %v1475
      %v1516 = vpack.c.b16 %v1481, %v1476
      %v1517 = vpack.c.b16 %v1482, %v1477
      %v1518 = vpack.c.b16 %v1483, %v1478
      %v1519 = vpack.c.b16 %v1489, %v1484
      %v1520 = vpack.c.b16 %v1490, %v1485
      %v1521 = vpack.c.b16 %v1491, %v1486
      %v1522 = vpack.c.b16 %v1492, %v1487
      %v1523 = vpack.c.b16 %v1493, %v1488
      %v1524 = vpack.c.b16 %v1499, %v1494
      %v1525 = vpack.c.b16 %v1500, %v1495
      %v1526 = vpack.c.b16 %v1501, %v1496
      %v1527 = vpack.c.b16 %v1502, %v1497
      %v1528 = vpack.c.b16 %v1503, %v1498
      %v1529 = vpack.c.b16 %v1509, %v1504
      %v1530 = vpack.c.b16 %v1510, %v1505
      %v1531 = vpack.c.b16 %v1511, %v1506
      %v1532 = vpack.c.b16 %v1512, %v1507
      %v1533 = vpack.c.b16 %v1513, %v1508
      %vm1550 = vcmask 523264
      %v1552 = vsel %vm1550, %v1518, 0
      %v1555 = vsel %vm1550, %v1523, 0
      %v1558 = vsel %vm1550, %v1528, 0
      %v1561 = vsel %vm1550, %v1533, 0
      %1563 = vmatpush.bf16.msra.mxu0 %v1060
      %1564 = vmatpush.bf16.msra.mxu0 %v1058
      %1565 = vmatpush.bf16.msra.mxu0 %v1056
      %1566 = vmatpush.bf16.msra.mxu0 %v1054
      %1567 = vmatpush.bf16.msra.mxu0 %v960
      %1568 = vmatpush.bf16.msra.mxu0 %v958
      %1569 = vmatpush.bf16.msra.mxu0 %v956
      %1570 = vmatpush.bf16.msra.mxu0 %v954
      %1571 = vmatmul.bf16.gmra.mxu0 %v1514
      %v1572 = vpop.f32.mrf.mxu0
      %v1573 = vadd.f32 %v1413, %v1572
      %v1574 = vpop.f32.mrf.mxu0
      %v1575 = vadd.f32 %v1418, %v1574
      %1576 = vmatmul.bf16.gmra.mxu0 %v1519
      %v1577 = vpop.f32.mrf.mxu0
      %v1578 = vadd.f32 %v1423, %v1577
      %v1579 = vpop.f32.mrf.mxu0
      %v1580 = vadd.f32 %v1428, %v1579
      %1581 = vmatmul.bf16.gmra.mxu0 %v1524
      %v1582 = vpop.f32.mrf.mxu0
      %v1583 = vadd.f32 %v1433, %v1582
      %v1584 = vpop.f32.mrf.mxu0
      %v1585 = vadd.f32 %v1438, %v1584
      %1586 = vmatmul.bf16.gmra.mxu0 %v1529
      %v1587 = vpop.f32.mrf.mxu0
      %v1588 = vadd.f32 %v1443, %v1587
      %v1589 = vpop.f32.mrf.mxu0
      %v1590 = vadd.f32 %v1448, %v1589
      %1591 = vdwg.mxu0
      %1592 = vmatpush.bf16.msra.mxu0 %v1164
      %1593 = vmatpush.bf16.msra.mxu0 %v1162
      %1594 = vmatpush.bf16.msra.mxu0 %v1160
      %1595 = vmatpush.bf16.msra.mxu0 %v1158
      %1596 = vmatpush.bf16.msra.mxu0 %v1112
      %1597 = vmatpush.bf16.msra.mxu0 %v1110
      %1598 = vmatpush.bf16.msra.mxu0 %v1108
      %1599 = vmatpush.bf16.msra.mxu0 %v1106
      %1600 = vmatmul.bf16.gmra.mxu0 %v1515
      %v1601 = vpop.f32.mrf.mxu0
      %v1602 = vadd.f32 %v1573, %v1601
      %v1603 = vpop.f32.mrf.mxu0
      %v1604 = vadd.f32 %v1575, %v1603
      %1605 = vmatmul.bf16.gmra.mxu0 %v1520
      %v1606 = vpop.f32.mrf.mxu0
      %v1607 = vadd.f32 %v1578, %v1606
      %v1608 = vpop.f32.mrf.mxu0
      %v1609 = vadd.f32 %v1580, %v1608
      %1610 = vmatmul.bf16.gmra.mxu0 %v1525
      %v1611 = vpop.f32.mrf.mxu0
      %v1612 = vadd.f32 %v1583, %v1611
      %v1613 = vpop.f32.mrf.mxu0
      %v1614 = vadd.f32 %v1585, %v1613
      %1615 = vmatmul.bf16.gmra.mxu0 %v1530
      %v1616 = vpop.f32.mrf.mxu0
      %v1617 = vadd.f32 %v1588, %v1616
      %v1618 = vpop.f32.mrf.mxu0
      %v1619 = vadd.f32 %v1590, %v1618
      %1620 = vdwg.mxu0
      %1621 = vmatpush.bf16.msra.mxu0 %v1256
      %1622 = vmatpush.bf16.msra.mxu0 %v1254
      %1623 = vmatpush.bf16.msra.mxu0 %v1252
      %1624 = vmatpush.bf16.msra.mxu0 %v1250
      %1625 = vmatpush.bf16.msra.mxu0 %v1204
      %1626 = vmatpush.bf16.msra.mxu0 %v1202
      %1627 = vmatpush.bf16.msra.mxu0 %v1200
      %1628 = vmatpush.bf16.msra.mxu0 %v1198
      %1629 = vmatmul.bf16.gmra.mxu0 %v1516
      %v1630 = vpop.f32.mrf.mxu0
      %v1631 = vadd.f32 %v1602, %v1630
      %v1632 = vpop.f32.mrf.mxu0
      %v1633 = vadd.f32 %v1604, %v1632
      %1634 = vmatmul.bf16.gmra.mxu0 %v1521
      %v1635 = vpop.f32.mrf.mxu0
      %v1636 = vadd.f32 %v1607, %v1635
      %v1637 = vpop.f32.mrf.mxu0
      %v1638 = vadd.f32 %v1609, %v1637
      %1639 = vmatmul.bf16.gmra.mxu0 %v1526
      %v1640 = vpop.f32.mrf.mxu0
      %v1641 = vadd.f32 %v1612, %v1640
      %v1642 = vpop.f32.mrf.mxu0
      %v1643 = vadd.f32 %v1614, %v1642
      %1644 = vmatmul.bf16.gmra.mxu0 %v1531
      %v1645 = vpop.f32.mrf.mxu0
      %v1646 = vadd.f32 %v1617, %v1645
      %v1647 = vpop.f32.mrf.mxu0
      %v1648 = vadd.f32 %v1619, %v1647
      %1649 = vdwg.mxu0
      %1650 = vmatpush.bf16.msra.mxu0 %v1348
      %1651 = vmatpush.bf16.msra.mxu0 %v1346
      %1652 = vmatpush.bf16.msra.mxu0 %v1344
      %1653 = vmatpush.bf16.msra.mxu0 %v1342
      %1654 = vmatpush.bf16.msra.mxu0 %v1308
      %1655 = vmatpush.bf16.msra.mxu0 %v1306
      %1656 = vmatpush.bf16.msra.mxu0 %v1304
      %1657 = vmatpush.bf16.msra.mxu0 %v1302
      %1658 = vmatmul.bf16.gmra.mxu0 %v1517
      %v1659 = vpop.f32.mrf.mxu0
      %v1660 = vadd.f32 %v1631, %v1659
      %v1661 = vpop.f32.mrf.mxu0
      %v1662 = vadd.f32 %v1633, %v1661
      %1663 = vmatmul.bf16.gmra.mxu0 %v1522
      %v1664 = vpop.f32.mrf.mxu0
      %v1665 = vadd.f32 %v1636, %v1664
      %v1666 = vpop.f32.mrf.mxu0
      %v1667 = vadd.f32 %v1638, %v1666
      %1668 = vmatmul.bf16.gmra.mxu0 %v1527
      %v1669 = vpop.f32.mrf.mxu0
      %v1670 = vadd.f32 %v1641, %v1669
      %v1671 = vpop.f32.mrf.mxu0
      %v1672 = vadd.f32 %v1643, %v1671
      %1673 = vmatmul.bf16.gmra.mxu0 %v1532
      %v1674 = vpop.f32.mrf.mxu0
      %v1675 = vadd.f32 %v1646, %v1674
      %v1676 = vpop.f32.mrf.mxu0
      %v1677 = vadd.f32 %v1648, %v1676
      %1678 = vdwg.mxu0
      %1679 = vmatpush.bf16.msra.mxu0 0
      %1680 = vmatpush.bf16.msra.mxu0 0
      %1681 = vmatpush.bf16.msra.mxu0 0
      %1682 = vmatpush.bf16.msra.mxu0 0
      %1683 = vmatpush.bf16.msra.mxu0 %v1400
      %1684 = vmatpush.bf16.msra.mxu0 %v1398
      %1685 = vmatpush.bf16.msra.mxu0 %v1396
      %1686 = vmatpush.bf16.msra.mxu0 %v1394
      %1687 = vmatmul.bf16.gmra.mxu0 %v1552
      %v1688 = vpop.f32.mrf.mxu0
      %v1689 = vadd.f32 %v1660, %v1688
      %v1690 = vpop.f32.mrf.mxu0
      %v1691 = vadd.f32 %v1662, %v1690
      %1692 = vmatmul.bf16.gmra.mxu0 %v1555
      %v1693 = vpop.f32.mrf.mxu0
      %v1694 = vadd.f32 %v1665, %v1693
      %v1695 = vpop.f32.mrf.mxu0
      %v1696 = vadd.f32 %v1667, %v1695
      %1697 = vmatmul.bf16.gmra.mxu0 %v1558
      %v1698 = vpop.f32.mrf.mxu0
      %v1699 = vadd.f32 %v1670, %v1698
      %v1700 = vpop.f32.mrf.mxu0
      %v1701 = vadd.f32 %v1672, %v1700
      %1702 = vmatmul.bf16.gmra.mxu0 %v1561
      %v1703 = vpop.f32.mrf.mxu0
      %v1704 = vadd.f32 %v1675, %v1703
      %v1705 = vpop.f32.mrf.mxu0
      %v1706 = vadd.f32 %v1677, %v1705
      %1707 = vdwg.mxu0
      %1708 = vmatpush.bf16.msra.mxu0 %v1061
      %1709 = vmatpush.bf16.msra.mxu0 %v1059
      %1710 = vmatpush.bf16.msra.mxu0 %v1057
      %1711 = vmatpush.bf16.msra.mxu0 %v1055
      %1712 = vmatpush.bf16.msra.mxu0 %v961
      %1713 = vmatpush.bf16.msra.mxu0 %v959
      %1714 = vmatpush.bf16.msra.mxu0 %v957
      %1715 = vmatpush.bf16.msra.mxu0 %v955
      %1716 = vmatmul.bf16.gmra.mxu0 %v1514
      %v1717 = vpop.f32.mrf.mxu0
      %v1718 = vadd.f32 %v1413, %v1717
      %v1719 = vpop.f32.mrf.mxu0
      %v1720 = vadd.f32 %v1418, %v1719
      %1721 = vmatmul.bf16.gmra.mxu0 %v1519
      %v1722 = vpop.f32.mrf.mxu0
      %v1723 = vadd.f32 %v1423, %v1722
      %v1724 = vpop.f32.mrf.mxu0
      %v1725 = vadd.f32 %v1428, %v1724
      %1726 = vmatmul.bf16.gmra.mxu0 %v1524
      %v1727 = vpop.f32.mrf.mxu0
      %v1728 = vadd.f32 %v1433, %v1727
      %v1729 = vpop.f32.mrf.mxu0
      %v1730 = vadd.f32 %v1438, %v1729
      %1731 = vmatmul.bf16.gmra.mxu0 %v1529
      %v1732 = vpop.f32.mrf.mxu0
      %v1733 = vadd.f32 %v1443, %v1732
      %v1734 = vpop.f32.mrf.mxu0
      %v1735 = vadd.f32 %v1448, %v1734
      %1736 = vdwg.mxu0
      %1737 = vmatpush.bf16.msra.mxu0 %v1165
      %1738 = vmatpush.bf16.msra.mxu0 %v1163
      %1739 = vmatpush.bf16.msra.mxu0 %v1161
      %1740 = vmatpush.bf16.msra.mxu0 %v1159
      %1741 = vmatpush.bf16.msra.mxu0 %v1113
      %1742 = vmatpush.bf16.msra.mxu0 %v1111
      %1743 = vmatpush.bf16.msra.mxu0 %v1109
      %1744 = vmatpush.bf16.msra.mxu0 %v1107
      %1745 = vmatmul.bf16.gmra.mxu0 %v1515
      %v1746 = vpop.f32.mrf.mxu0
      %v1747 = vadd.f32 %v1718, %v1746
      %v1748 = vpop.f32.mrf.mxu0
      %v1749 = vadd.f32 %v1720, %v1748
      %1750 = vmatmul.bf16.gmra.mxu0 %v1520
      %v1751 = vpop.f32.mrf.mxu0
      %v1752 = vadd.f32 %v1723, %v1751
      %v1753 = vpop.f32.mrf.mxu0
      %v1754 = vadd.f32 %v1725, %v1753
      %1755 = vmatmul.bf16.gmra.mxu0 %v1525
      %v1756 = vpop.f32.mrf.mxu0
      %v1757 = vadd.f32 %v1728, %v1756
      %v1758 = vpop.f32.mrf.mxu0
      %v1759 = vadd.f32 %v1730, %v1758
      %1760 = vmatmul.bf16.gmra.mxu0 %v1530
      %v1761 = vpop.f32.mrf.mxu0
      %v1762 = vadd.f32 %v1733, %v1761
      %v1763 = vpop.f32.mrf.mxu0
      %v1764 = vadd.f32 %v1735, %v1763
      %1765 = vdwg.mxu0
      %1766 = vmatpush.bf16.msra.mxu0 %v1257
      %1767 = vmatpush.bf16.msra.mxu0 %v1255
      %1768 = vmatpush.bf16.msra.mxu0 %v1253
      %1769 = vmatpush.bf16.msra.mxu0 %v1251
      %1770 = vmatpush.bf16.msra.mxu0 %v1205
      %1771 = vmatpush.bf16.msra.mxu0 %v1203
      %1772 = vmatpush.bf16.msra.mxu0 %v1201
      %1773 = vmatpush.bf16.msra.mxu0 %v1199
      %1774 = vmatmul.bf16.gmra.mxu0 %v1516
      %v1775 = vpop.f32.mrf.mxu0
      %v1776 = vadd.f32 %v1747, %v1775
      %v1777 = vpop.f32.mrf.mxu0
      %v1778 = vadd.f32 %v1749, %v1777
      %1779 = vmatmul.bf16.gmra.mxu0 %v1521
      %v1780 = vpop.f32.mrf.mxu0
      %v1781 = vadd.f32 %v1752, %v1780
      %v1782 = vpop.f32.mrf.mxu0
      %v1783 = vadd.f32 %v1754, %v1782
      %1784 = vmatmul.bf16.gmra.mxu0 %v1526
      %v1785 = vpop.f32.mrf.mxu0
      %v1786 = vadd.f32 %v1757, %v1785
      %v1787 = vpop.f32.mrf.mxu0
      %v1788 = vadd.f32 %v1759, %v1787
      %1789 = vmatmul.bf16.gmra.mxu0 %v1531
      %v1790 = vpop.f32.mrf.mxu0
      %v1791 = vadd.f32 %v1762, %v1790
      %v1792 = vpop.f32.mrf.mxu0
      %v1793 = vadd.f32 %v1764, %v1792
      %1794 = vdwg.mxu0
      %1795 = vmatpush.bf16.msra.mxu0 %v1349
      %1796 = vmatpush.bf16.msra.mxu0 %v1347
      %1797 = vmatpush.bf16.msra.mxu0 %v1345
      %1798 = vmatpush.bf16.msra.mxu0 %v1343
      %1799 = vmatpush.bf16.msra.mxu0 %v1309
      %1800 = vmatpush.bf16.msra.mxu0 %v1307
      %1801 = vmatpush.bf16.msra.mxu0 %v1305
      %1802 = vmatpush.bf16.msra.mxu0 %v1303
      %1803 = vmatmul.bf16.gmra.mxu0 %v1517
      %v1804 = vpop.f32.mrf.mxu0
      %v1805 = vadd.f32 %v1776, %v1804
      %v1806 = vpop.f32.mrf.mxu0
      %v1807 = vadd.f32 %v1778, %v1806
      %1808 = vmatmul.bf16.gmra.mxu0 %v1522
      %v1809 = vpop.f32.mrf.mxu0
      %v1810 = vadd.f32 %v1781, %v1809
      %v1811 = vpop.f32.mrf.mxu0
      %v1812 = vadd.f32 %v1783, %v1811
      %1813 = vmatmul.bf16.gmra.mxu0 %v1527
      %v1814 = vpop.f32.mrf.mxu0
      %v1815 = vadd.f32 %v1786, %v1814
      %v1816 = vpop.f32.mrf.mxu0
      %v1817 = vadd.f32 %v1788, %v1816
      %1818 = vmatmul.bf16.gmra.mxu0 %v1532
      %v1819 = vpop.f32.mrf.mxu0
      %v1820 = vadd.f32 %v1791, %v1819
      %v1821 = vpop.f32.mrf.mxu0
      %v1822 = vadd.f32 %v1793, %v1821
      %1823 = vdwg.mxu0
      %1824 = vmatpush.bf16.msra.mxu0 0
      %1825 = vmatpush.bf16.msra.mxu0 0
      %1826 = vmatpush.bf16.msra.mxu0 0
      %1827 = vmatpush.bf16.msra.mxu0 0
      %1828 = vmatpush.bf16.msra.mxu0 %v1401
      %1829 = vmatpush.bf16.msra.mxu0 %v1399
      %1830 = vmatpush.bf16.msra.mxu0 %v1397
      %1831 = vmatpush.bf16.msra.mxu0 %v1395
      %1832 = vmatmul.bf16.gmra.mxu0 %v1552
      %v1833 = vpop.f32.mrf.mxu0
      %v1834 = vadd.f32 %v1805, %v1833
      %v1835 = vpop.f32.mrf.mxu0
      %v1836 = vadd.f32 %v1807, %v1835
      %1837 = vmatmul.bf16.gmra.mxu0 %v1555
      %v1838 = vpop.f32.mrf.mxu0
      %v1839 = vadd.f32 %v1810, %v1838
      %v1840 = vpop.f32.mrf.mxu0
      %v1841 = vadd.f32 %v1812, %v1840
      %1842 = vmatmul.bf16.gmra.mxu0 %v1558
      %v1843 = vpop.f32.mrf.mxu0
      %v1844 = vadd.f32 %v1815, %v1843
      %v1845 = vpop.f32.mrf.mxu0
      %v1846 = vadd.f32 %v1817, %v1845
      %1847 = vmatmul.bf16.gmra.mxu0 %v1561
      %v1848 = vpop.f32.mrf.mxu0
      %v1849 = vadd.f32 %v1820, %v1848
      %v1850 = vpop.f32.mrf.mxu0
      %v1851 = vadd.f32 %v1822, %v1850
      %1852 = vdwg.mxu0
      %v1853 = vmax.f32 %v1689, 0.0
      %v1854 = vmax.f32 %v1834, 0.0
      %v1855 = vmax.f32 %v1691, 0.0
      %v1856 = vmax.f32 %v1836, 0.0
      %v1857 = vmax.f32 %v1694, 0.0
      %v1858 = vmax.f32 %v1839, 0.0
      %v1859 = vmax.f32 %v1696, 0.0
      %v1860 = vmax.f32 %v1841, 0.0
      %v1861 = vmax.f32 %v1699, 0.0
      %v1862 = vmax.f32 %v1844, 0.0
      %v1863 = vmax.f32 %v1701, 0.0
      %v1864 = vmax.f32 %v1846, 0.0
      %v1865 = vmax.f32 %v1704, 0.0
      %v1866 = vmax.f32 %v1849, 0.0
      %v1867 = vmax.f32 %v1706, 0.0
      %v1868 = vmax.f32 %v1851, 0.0
      %v1869 = vpack.c.bf16 %v1854, %v1853
      %v1870 = vpack.c.bf16 %v1856, %v1855
      %v1871 = vpack.c.bf16 %v1858, %v1857
      %v1872 = vpack.c.bf16 %v1860, %v1859
      %v1873 = vpack.c.bf16 %v1862, %v1861
      %v1874 = vpack.c.bf16 %v1864, %v1863
      %v1875 = vpack.c.bf16 %v1866, %v1865
      %v1876 = vpack.c.bf16 %v1868, %v1867
      %v1877 = vld [vmem:[%s5] sm:$0xff]
      %v1878 = vld [vmem:[%s5 + $0x8] sm:$0x3]
      %v1879 = vld [vmem:[%s6] sm:$0xf]
      %v1888 = vunpack.c.l.b16 %v1869
      %v1889 = vunpack.c.h.b16 %v1869
      %v1890 = vunpack.c.l.b16 %v1870
      %v1891 = vunpack.c.h.b16 %v1870
      %v1892 = vunpack.c.l.b16 %v1871
      %v1893 = vunpack.c.h.b16 %v1871
      %v1894 = vunpack.c.l.b16 %v1872
      %v1895 = vunpack.c.h.b16 %v1872
      %v1896 = vunpack.c.l.b16 %v1873
      %v1897 = vunpack.c.h.b16 %v1873
      %v1898 = vunpack.c.l.b16 %v1874
      %v1899 = vunpack.c.h.b16 %v1874
      %v1900 = vunpack.c.l.b16 %v1875
      %v1901 = vunpack.c.h.b16 %v1875
      %v1902 = vunpack.c.l.b16 %v1876
      %v1903 = vunpack.c.h.b16 %v1876
      %v1904 = vpack.c.b16 %v1890, %v1888
      %v1905 = vpack.c.b16 %v1891, %v1889
      %v1906 = vpack.c.b16 %v1894, %v1892
      %v1907 = vpack.c.b16 %v1895, %v1893
      %v1908 = vpack.c.b16 %v1898, %v1896
      %v1909 = vpack.c.b16 %v1899, %v1897
      %v1910 = vpack.c.b16 %v1902, %v1900
      %v1911 = vpack.c.b16 %v1903, %v1901
      %1912 = vrot.lane.b32.xlu0 %v1904, 17
      %v1913 = vpop.permute.xlu0 %1912
      %1914 = vrot.lane.b32.xlu0 %v1905, 17
      %v1915 = vpop.permute.xlu0 %1914
      %1916 = vrot.lane.b32.xlu0 %v1906, 17
      %v1917 = vpop.permute.xlu0 %1916
      %1918 = vrot.lane.b32.xlu0 %v1907, 17
      %v1919 = vpop.permute.xlu0 %1918
      %1920 = vrot.lane.b32.xlu0 %v1908, 17
      %v1921 = vpop.permute.xlu0 %1920
      %1922 = vrot.lane.b32.xlu0 %v1909, 17
      %v1923 = vpop.permute.xlu0 %1922
      %1924 = vrot.lane.b32.xlu0 %v1910, 17
      %v1925 = vpop.permute.xlu0 %1924
      %1926 = vrot.lane.b32.xlu0 %v1911, 17
      %v1927 = vpop.permute.xlu0 %1926
      %v1928 = vsel %vm346, %v1913, %v1915
      %v1929 = vsel %vm346, %v1917, %v1919
      %v1930 = vsel %vm346, %v1921, %v1923
      %v1931 = vsel %vm346, %v1925, %v1927
      %v1937 = vsel %vm349, 0, %v1913
      %v1940 = vsel %vm349, 0, %v1917
      %v1943 = vsel %vm349, 0, %v1921
      %v1946 = vsel %vm349, 0, %v1925
      %v1949 = vsel %vm349, %v1915, 0
      %v1952 = vsel %vm349, %v1919, 0
      %v1955 = vsel %vm349, %v1923, 0
      %v1958 = vsel %vm349, %v1927, 0
      %v1960 = vsel %vm371, %v1937, 0
      %v1961 = vsel %vm378, %v1928, 0
      %v1962 = vsel %vm371, %v1940, 0
      %v1963 = vsel %vm378, %v1929, 0
      %v1964 = vsel %vm371, %v1943, 0
      %v1965 = vsel %vm378, %v1930, 0
      %v1966 = vsel %vm371, %v1946, 0
      %v1967 = vsel %vm378, %v1931, 0
      %v1968 = vsel %vm401, %v1937, 0
      %v1969 = vsel %vm408, %v1928, 0
      %v1970 = vsel %vm415, %v1949, 0
      %v1971 = vsel %vm401, %v1940, 0
      %v1972 = vsel %vm408, %v1929, 0
      %v1973 = vsel %vm415, %v1952, 0
      %v1974 = vsel %vm401, %v1943, 0
      %v1975 = vsel %vm408, %v1930, 0
      %v1976 = vsel %vm415, %v1955, 0
      %v1977 = vsel %vm401, %v1946, 0
      %v1978 = vsel %vm408, %v1931, 0
      %v1979 = vsel %vm415, %v1958, 0
      %v1980 = vsel %vm431, %v1937, 0
      %v1981 = vsel %vm438, %v1928, 0
      %v1982 = vsel %vm445, %v1949, 0
      %v1983 = vsel %vm431, %v1940, 0
      %v1984 = vsel %vm438, %v1929, 0
      %v1985 = vsel %vm445, %v1952, 0
      %v1986 = vsel %vm431, %v1943, 0
      %v1987 = vsel %vm438, %v1930, 0
      %v1988 = vsel %vm445, %v1955, 0
      %v1989 = vsel %vm431, %v1946, 0
      %v1990 = vsel %vm438, %v1931, 0
      %v1991 = vsel %vm445, %v1958, 0
      %v1992 = vsel %vm461, %v1937, 0
      %v1993 = vsel %vm468, %v1928, 0
      %v1994 = vsel %vm475, %v1949, 0
      %v1995 = vsel %vm461, %v1940, 0
      %v1996 = vsel %vm468, %v1929, 0
      %v1997 = vsel %vm475, %v1952, 0
      %v1998 = vsel %vm461, %v1943, 0
      %v1999 = vsel %vm468, %v1930, 0
      %v2000 = vsel %vm475, %v1955, 0
      %v2001 = vsel %vm461, %v1946, 0
      %v2002 = vsel %vm468, %v1931, 0
      %v2003 = vsel %vm475, %v1958, 0
      %v2004 = vsel %vm491, %v1937, 0
      %v2005 = vsel %vm498, %v1928, 0
      %v2006 = vsel %vm505, %v1949, 0
      %v2007 = vsel %vm491, %v1940, 0
      %v2008 = vsel %vm498, %v1929, 0
      %v2009 = vsel %vm505, %v1952, 0
      %v2010 = vsel %vm491, %v1943, 0
      %v2011 = vsel %vm498, %v1930, 0
      %v2012 = vsel %vm505, %v1955, 0
      %v2013 = vsel %vm491, %v1946, 0
      %v2014 = vsel %vm498, %v1931, 0
      %v2015 = vsel %vm505, %v1958, 0
      %v2016 = vsel %vm521, %v1937, 0
      %v2017 = vsel %vm528, %v1928, 0
      %v2018 = vsel %vm535, %v1949, 0
      %v2019 = vsel %vm521, %v1940, 0
      %v2020 = vsel %vm528, %v1929, 0
      %v2021 = vsel %vm535, %v1952, 0
      %v2022 = vsel %vm521, %v1943, 0
      %v2023 = vsel %vm528, %v1930, 0
      %v2024 = vsel %vm535, %v1955, 0
      %v2025 = vsel %vm521, %v1946, 0
      %v2026 = vsel %vm528, %v1931, 0
      %v2027 = vsel %vm535, %v1958, 0
      %2036 = vrot.lane.b32.xlu0 %v1937, 127
      %v2037 = vpop.permute.xlu0 %2036
      %2038 = vrot.lane.b32.xlu0 %v1928, 127
      %v2039 = vpop.permute.xlu0 %2038
      %2040 = vrot.lane.b32.xlu0 %v1949, 127
      %v2041 = vpop.permute.xlu0 %2040
      %2042 = vrot.lane.b32.xlu0 %v1940, 127
      %v2043 = vpop.permute.xlu0 %2042
      %2044 = vrot.lane.b32.xlu0 %v1929, 127
      %v2045 = vpop.permute.xlu0 %2044
      %2046 = vrot.lane.b32.xlu0 %v1952, 127
      %v2047 = vpop.permute.xlu0 %2046
      %2048 = vrot.lane.b32.xlu0 %v1943, 127
      %v2049 = vpop.permute.xlu0 %2048
      %2050 = vrot.lane.b32.xlu0 %v1930, 127
      %v2051 = vpop.permute.xlu0 %2050
      %2052 = vrot.lane.b32.xlu0 %v1955, 127
      %v2053 = vpop.permute.xlu0 %2052
      %2054 = vrot.lane.b32.xlu0 %v1946, 127
      %v2055 = vpop.permute.xlu0 %2054
      %2056 = vrot.lane.b32.xlu0 %v1931, 127
      %v2057 = vpop.permute.xlu0 %2056
      %2058 = vrot.lane.b32.xlu0 %v1958, 127
      %v2059 = vpop.permute.xlu0 %2058
      %v2060 = vsel %vm550, %v2037, %v2039
      %v2061 = vsel %vm550, %v2039, %v2041
      %v2062 = vsel %vm550, %v2043, %v2045
      %v2063 = vsel %vm550, %v2045, %v2047
      %v2064 = vsel %vm550, %v2049, %v2051
      %v2065 = vsel %vm550, %v2051, %v2053
      %v2066 = vsel %vm550, %v2055, %v2057
      %v2067 = vsel %vm550, %v2057, %v2059
      %2088 = vrot.lane.b32.xlu0 %v1968, 126
      %v2089 = vpop.permute.xlu0 %2088
      %2090 = vrot.lane.b32.xlu0 %v1969, 126
      %v2091 = vpop.permute.xlu0 %2090
      %2092 = vrot.lane.b32.xlu0 %v1970, 126
      %v2093 = vpop.permute.xlu0 %2092
      %2094 = vrot.lane.b32.xlu0 %v1971, 126
      %v2095 = vpop.permute.xlu0 %2094
      %2096 = vrot.lane.b32.xlu0 %v1972, 126
      %v2097 = vpop.permute.xlu0 %2096
      %2098 = vrot.lane.b32.xlu0 %v1973, 126
      %v2099 = vpop.permute.xlu0 %2098
      %2100 = vrot.lane.b32.xlu0 %v1974, 126
      %v2101 = vpop.permute.xlu0 %2100
      %2102 = vrot.lane.b32.xlu0 %v1975, 126
      %v2103 = vpop.permute.xlu0 %2102
      %2104 = vrot.lane.b32.xlu0 %v1976, 126
      %v2105 = vpop.permute.xlu0 %2104
      %2106 = vrot.lane.b32.xlu0 %v1977, 126
      %v2107 = vpop.permute.xlu0 %2106
      %2108 = vrot.lane.b32.xlu0 %v1978, 126
      %v2109 = vpop.permute.xlu0 %2108
      %2110 = vrot.lane.b32.xlu0 %v1979, 126
      %v2111 = vpop.permute.xlu0 %2110
      %v2112 = vsel %vm565, %v2089, %v2091
      %v2113 = vsel %vm565, %v2091, %v2093
      %v2114 = vsel %vm565, %v2095, %v2097
      %v2115 = vsel %vm565, %v2097, %v2099
      %v2116 = vsel %vm565, %v2101, %v2103
      %v2117 = vsel %vm565, %v2103, %v2105
      %v2118 = vsel %vm565, %v2107, %v2109
      %v2119 = vsel %vm565, %v2109, %v2111
      %2140 = vrot.lane.b32.xlu0 %v1980, 112
      %v2141 = vpop.permute.xlu0 %2140
      %2142 = vrot.lane.b32.xlu0 %v1981, 112
      %v2143 = vpop.permute.xlu0 %2142
      %2144 = vrot.lane.b32.xlu0 %v1982, 112
      %v2145 = vpop.permute.xlu0 %2144
      %2146 = vrot.lane.b32.xlu0 %v1983, 112
      %v2147 = vpop.permute.xlu0 %2146
      %2148 = vrot.lane.b32.xlu0 %v1984, 112
      %v2149 = vpop.permute.xlu0 %2148
      %2150 = vrot.lane.b32.xlu0 %v1985, 112
      %v2151 = vpop.permute.xlu0 %2150
      %2152 = vrot.lane.b32.xlu0 %v1986, 112
      %v2153 = vpop.permute.xlu0 %2152
      %2154 = vrot.lane.b32.xlu0 %v1987, 112
      %v2155 = vpop.permute.xlu0 %2154
      %2156 = vrot.lane.b32.xlu0 %v1988, 112
      %v2157 = vpop.permute.xlu0 %2156
      %2158 = vrot.lane.b32.xlu0 %v1989, 112
      %v2159 = vpop.permute.xlu0 %2158
      %2160 = vrot.lane.b32.xlu0 %v1990, 112
      %v2161 = vpop.permute.xlu0 %2160
      %2162 = vrot.lane.b32.xlu0 %v1991, 112
      %v2163 = vpop.permute.xlu0 %2162
      %v2164 = vsel %vm580, %v2141, %v2143
      %v2165 = vsel %vm580, %v2143, %v2145
      %v2166 = vsel %vm580, %v2147, %v2149
      %v2167 = vsel %vm580, %v2149, %v2151
      %v2168 = vsel %vm580, %v2153, %v2155
      %v2169 = vsel %vm580, %v2155, %v2157
      %v2170 = vsel %vm580, %v2159, %v2161
      %v2171 = vsel %vm580, %v2161, %v2163
      %2180 = vrot.lane.b32.xlu0 %v1937, 111
      %v2181 = vpop.permute.xlu0 %2180
      %2182 = vrot.lane.b32.xlu0 %v1928, 111
      %v2183 = vpop.permute.xlu0 %2182
      %2184 = vrot.lane.b32.xlu0 %v1949, 111
      %v2185 = vpop.permute.xlu0 %2184
      %2186 = vrot.lane.b32.xlu0 %v1940, 111
      %v2187 = vpop.permute.xlu0 %2186
      %2188 = vrot.lane.b32.xlu0 %v1929, 111
      %v2189 = vpop.permute.xlu0 %2188
      %2190 = vrot.lane.b32.xlu0 %v1952, 111
      %v2191 = vpop.permute.xlu0 %2190
      %2192 = vrot.lane.b32.xlu0 %v1943, 111
      %v2193 = vpop.permute.xlu0 %2192
      %2194 = vrot.lane.b32.xlu0 %v1930, 111
      %v2195 = vpop.permute.xlu0 %2194
      %2196 = vrot.lane.b32.xlu0 %v1955, 111
      %v2197 = vpop.permute.xlu0 %2196
      %2198 = vrot.lane.b32.xlu0 %v1946, 111
      %v2199 = vpop.permute.xlu0 %2198
      %2200 = vrot.lane.b32.xlu0 %v1931, 111
      %v2201 = vpop.permute.xlu0 %2200
      %2202 = vrot.lane.b32.xlu0 %v1958, 111
      %v2203 = vpop.permute.xlu0 %2202
      %v2204 = vsel %vm589, %v2181, %v2183
      %v2205 = vsel %vm589, %v2183, %v2185
      %v2206 = vsel %vm589, %v2187, %v2189
      %v2207 = vsel %vm589, %v2189, %v2191
      %v2208 = vsel %vm589, %v2193, %v2195
      %v2209 = vsel %vm589, %v2195, %v2197
      %v2210 = vsel %vm589, %v2199, %v2201
      %v2211 = vsel %vm589, %v2201, %v2203
      %2232 = vrot.lane.b32.xlu0 %v1992, 110
      %v2233 = vpop.permute.xlu0 %2232
      %2234 = vrot.lane.b32.xlu0 %v1993, 110
      %v2235 = vpop.permute.xlu0 %2234
      %2236 = vrot.lane.b32.xlu0 %v1994, 110
      %v2237 = vpop.permute.xlu0 %2236
      %2238 = vrot.lane.b32.xlu0 %v1995, 110
      %v2239 = vpop.permute.xlu0 %2238
      %2240 = vrot.lane.b32.xlu0 %v1996, 110
      %v2241 = vpop.permute.xlu0 %2240
      %2242 = vrot.lane.b32.xlu0 %v1997, 110
      %v2243 = vpop.permute.xlu0 %2242
      %2244 = vrot.lane.b32.xlu0 %v1998, 110
      %v2245 = vpop.permute.xlu0 %2244
      %2246 = vrot.lane.b32.xlu0 %v1999, 110
      %v2247 = vpop.permute.xlu0 %2246
      %2248 = vrot.lane.b32.xlu0 %v2000, 110
      %v2249 = vpop.permute.xlu0 %2248
      %2250 = vrot.lane.b32.xlu0 %v2001, 110
      %v2251 = vpop.permute.xlu0 %2250
      %2252 = vrot.lane.b32.xlu0 %v2002, 110
      %v2253 = vpop.permute.xlu0 %2252
      %2254 = vrot.lane.b32.xlu0 %v2003, 110
      %v2255 = vpop.permute.xlu0 %2254
      %v2256 = vsel %vm604, %v2233, %v2235
      %v2257 = vsel %vm604, %v2235, %v2237
      %v2258 = vsel %vm604, %v2239, %v2241
      %v2259 = vsel %vm604, %v2241, %v2243
      %v2260 = vsel %vm604, %v2245, %v2247
      %v2261 = vsel %vm604, %v2247, %v2249
      %v2262 = vsel %vm604, %v2251, %v2253
      %v2263 = vsel %vm604, %v2253, %v2255
      %2284 = vrot.lane.b32.xlu0 %v2004, 96
      %v2285 = vpop.permute.xlu0 %2284
      %2286 = vrot.lane.b32.xlu0 %v2005, 96
      %v2287 = vpop.permute.xlu0 %2286
      %2288 = vrot.lane.b32.xlu0 %v2006, 96
      %v2289 = vpop.permute.xlu0 %2288
      %2290 = vrot.lane.b32.xlu0 %v2007, 96
      %v2291 = vpop.permute.xlu0 %2290
      %2292 = vrot.lane.b32.xlu0 %v2008, 96
      %v2293 = vpop.permute.xlu0 %2292
      %2294 = vrot.lane.b32.xlu0 %v2009, 96
      %v2295 = vpop.permute.xlu0 %2294
      %2296 = vrot.lane.b32.xlu0 %v2010, 96
      %v2297 = vpop.permute.xlu0 %2296
      %2298 = vrot.lane.b32.xlu0 %v2011, 96
      %v2299 = vpop.permute.xlu0 %2298
      %2300 = vrot.lane.b32.xlu0 %v2012, 96
      %v2301 = vpop.permute.xlu0 %2300
      %2302 = vrot.lane.b32.xlu0 %v2013, 96
      %v2303 = vpop.permute.xlu0 %2302
      %2304 = vrot.lane.b32.xlu0 %v2014, 96
      %v2305 = vpop.permute.xlu0 %2304
      %2306 = vrot.lane.b32.xlu0 %v2015, 96
      %v2307 = vpop.permute.xlu0 %2306
      %v2308 = vsel %vm619, %v2285, %v2287
      %v2309 = vsel %vm619, %v2287, %v2289
      %v2310 = vsel %vm619, %v2291, %v2293
      %v2311 = vsel %vm619, %v2293, %v2295
      %v2312 = vsel %vm619, %v2297, %v2299
      %v2313 = vsel %vm619, %v2299, %v2301
      %v2314 = vsel %vm619, %v2303, %v2305
      %v2315 = vsel %vm619, %v2305, %v2307
      %2324 = vrot.lane.b32.xlu0 %v1937, 95
      %v2325 = vpop.permute.xlu0 %2324
      %2326 = vrot.lane.b32.xlu0 %v1928, 95
      %v2327 = vpop.permute.xlu0 %2326
      %2328 = vrot.lane.b32.xlu0 %v1949, 95
      %v2329 = vpop.permute.xlu0 %2328
      %2330 = vrot.lane.b32.xlu0 %v1940, 95
      %v2331 = vpop.permute.xlu0 %2330
      %2332 = vrot.lane.b32.xlu0 %v1929, 95
      %v2333 = vpop.permute.xlu0 %2332
      %2334 = vrot.lane.b32.xlu0 %v1952, 95
      %v2335 = vpop.permute.xlu0 %2334
      %2336 = vrot.lane.b32.xlu0 %v1943, 95
      %v2337 = vpop.permute.xlu0 %2336
      %2338 = vrot.lane.b32.xlu0 %v1930, 95
      %v2339 = vpop.permute.xlu0 %2338
      %2340 = vrot.lane.b32.xlu0 %v1955, 95
      %v2341 = vpop.permute.xlu0 %2340
      %2342 = vrot.lane.b32.xlu0 %v1946, 95
      %v2343 = vpop.permute.xlu0 %2342
      %2344 = vrot.lane.b32.xlu0 %v1931, 95
      %v2345 = vpop.permute.xlu0 %2344
      %2346 = vrot.lane.b32.xlu0 %v1958, 95
      %v2347 = vpop.permute.xlu0 %2346
      %v2348 = vsel %vm631, %v2325, %v2327
      %v2349 = vsel %vm631, %v2327, %v2329
      %v2350 = vsel %vm631, %v2331, %v2333
      %v2351 = vsel %vm631, %v2333, %v2335
      %v2352 = vsel %vm631, %v2337, %v2339
      %v2353 = vsel %vm631, %v2339, %v2341
      %v2354 = vsel %vm631, %v2343, %v2345
      %v2355 = vsel %vm631, %v2345, %v2347
      %2376 = vrot.lane.b32.xlu0 %v2016, 94
      %v2377 = vpop.permute.xlu0 %2376
      %2378 = vrot.lane.b32.xlu0 %v2017, 94
      %v2379 = vpop.permute.xlu0 %2378
      %2380 = vrot.lane.b32.xlu0 %v2018, 94
      %v2381 = vpop.permute.xlu0 %2380
      %2382 = vrot.lane.b32.xlu0 %v2019, 94
      %v2383 = vpop.permute.xlu0 %2382
      %2384 = vrot.lane.b32.xlu0 %v2020, 94
      %v2385 = vpop.permute.xlu0 %2384
      %2386 = vrot.lane.b32.xlu0 %v2021, 94
      %v2387 = vpop.permute.xlu0 %2386
      %2388 = vrot.lane.b32.xlu0 %v2022, 94
      %v2389 = vpop.permute.xlu0 %2388
      %2390 = vrot.lane.b32.xlu0 %v2023, 94
      %v2391 = vpop.permute.xlu0 %2390
      %2392 = vrot.lane.b32.xlu0 %v2024, 94
      %v2393 = vpop.permute.xlu0 %2392
      %2394 = vrot.lane.b32.xlu0 %v2025, 94
      %v2395 = vpop.permute.xlu0 %2394
      %2396 = vrot.lane.b32.xlu0 %v2026, 94
      %v2397 = vpop.permute.xlu0 %2396
      %2398 = vrot.lane.b32.xlu0 %v2027, 94
      %v2399 = vpop.permute.xlu0 %2398
      %v2400 = vsel %vm643, %v2377, %v2379
      %v2401 = vsel %vm643, %v2379, %v2381
      %v2402 = vsel %vm643, %v2383, %v2385
      %v2403 = vsel %vm643, %v2385, %v2387
      %v2404 = vsel %vm643, %v2389, %v2391
      %v2405 = vsel %vm643, %v2391, %v2393
      %v2406 = vsel %vm643, %v2395, %v2397
      %v2407 = vsel %vm643, %v2397, %v2399
      %2417 = vset.pattern.permute.xlu0 0
      %2418 = vperm.xlu0 %2417, %v1879
      %v2419 = vpop.permute.xlu0 %2418
      %2422 = vst [vmem:[#allocation1] ss:$4 sm:$0xff] %v1877
      %s2424 = scalar_lea.vmem [#allocation1], 32
      %2425 = vst [vmem:[%s2424] ss:$4 sm:$0xff] %v1878
      %v2426 = vld.sshfl [vmem:[#allocation1] sm:$0xff pattern:$0x73625140]
      %v2427 = vld.sshfl [vmem:[#allocation1 + $0x8] sm:$0xff pattern:$0x73625140]
      %v2428 = vld.sshfl [vmem:[#allocation1 + $0x10] sm:$0xff pattern:$0x73625140]
      %v2429 = vld.sshfl [vmem:[#allocation1 + $0x18] sm:$0xff pattern:$0x73625140]
      %v2430 = vld.sshfl [vmem:[#allocation1 + $0x20] sm:$0xff pattern:$0x73625140]
      %v2435 = vsel %vm1550, %v2430, 0
      %2437 = vmatpush.bf16.msra.mxu0 %v2066
      %2438 = vmatpush.bf16.msra.mxu0 %v2064
      %2439 = vmatpush.bf16.msra.mxu0 %v2062
      %2440 = vmatpush.bf16.msra.mxu0 %v2060
      %2441 = vmatpush.bf16.msra.mxu0 %v1966
      %2442 = vmatpush.bf16.msra.mxu0 %v1964
      %2443 = vmatpush.bf16.msra.mxu0 %v1962
      %2444 = vmatpush.bf16.msra.mxu0 %v1960
      %2445 = vmatmul.bf16.gmra.mxu0 %v2426
      %v2446 = vpop.f32.mrf.mxu0
      %v2447 = vadd.f32 %v2419, %v2446
      %v2448 = vpop.f32.mrf.mxu0
      %2449 = vdwg.mxu0
      %2450 = vmatpush.bf16.msra.mxu0 %v2170
      %2451 = vmatpush.bf16.msra.mxu0 %v2168
      %2452 = vmatpush.bf16.msra.mxu0 %v2166
      %2453 = vmatpush.bf16.msra.mxu0 %v2164
      %2454 = vmatpush.bf16.msra.mxu0 %v2118
      %2455 = vmatpush.bf16.msra.mxu0 %v2116
      %2456 = vmatpush.bf16.msra.mxu0 %v2114
      %2457 = vmatpush.bf16.msra.mxu0 %v2112
      %2458 = vmatmul.bf16.gmra.mxu0 %v2427
      %v2459 = vpop.f32.mrf.mxu0
      %v2460 = vadd.f32 %v2447, %v2459
      %v2461 = vpop.f32.mrf.mxu0
      %2462 = vdwg.mxu0
      %2463 = vmatpush.bf16.msra.mxu0 %v2262
      %2464 = vmatpush.bf16.msra.mxu0 %v2260
      %2465 = vmatpush.bf16.msra.mxu0 %v2258
      %2466 = vmatpush.bf16.msra.mxu0 %v2256
      %2467 = vmatpush.bf16.msra.mxu0 %v2210
      %2468 = vmatpush.bf16.msra.mxu0 %v2208
      %2469 = vmatpush.bf16.msra.mxu0 %v2206
      %2470 = vmatpush.bf16.msra.mxu0 %v2204
      %2471 = vmatmul.bf16.gmra.mxu0 %v2428
      %v2472 = vpop.f32.mrf.mxu0
      %v2473 = vadd.f32 %v2460, %v2472
      %v2474 = vpop.f32.mrf.mxu0
      %2475 = vdwg.mxu0
      %2476 = vmatpush.bf16.msra.mxu0 %v2354
      %2477 = vmatpush.bf16.msra.mxu0 %v2352
      %2478 = vmatpush.bf16.msra.mxu0 %v2350
      %2479 = vmatpush.bf16.msra.mxu0 %v2348
      %2480 = vmatpush.bf16.msra.mxu0 %v2314
      %2481 = vmatpush.bf16.msra.mxu0 %v2312
      %2482 = vmatpush.bf16.msra.mxu0 %v2310
      %2483 = vmatpush.bf16.msra.mxu0 %v2308
      %2484 = vmatmul.bf16.gmra.mxu0 %v2429
      %v2485 = vpop.f32.mrf.mxu0
      %v2486 = vadd.f32 %v2473, %v2485
      %v2487 = vpop.f32.mrf.mxu0
      %2488 = vdwg.mxu0
      %2489 = vmatpush.bf16.msra.mxu0 0
      %2490 = vmatpush.bf16.msra.mxu0 0
      %2491 = vmatpush.bf16.msra.mxu0 0
      %2492 = vmatpush.bf16.msra.mxu0 0
      %2493 = vmatpush.bf16.msra.mxu0 %v2406
      %2494 = vmatpush.bf16.msra.mxu0 %v2404
      %2495 = vmatpush.bf16.msra.mxu0 %v2402
      %2496 = vmatpush.bf16.msra.mxu0 %v2400
      %2497 = vmatmul.bf16.gmra.mxu0 %v2435
      %v2498 = vpop.f32.mrf.mxu0
      %v2499 = vadd.f32 %v2486, %v2498
      %v2500 = vpop.f32.mrf.mxu0
      %2501 = vdwg.mxu0
      %2502 = vmatpush.bf16.msra.mxu0 %v2067
      %2503 = vmatpush.bf16.msra.mxu0 %v2065
      %2504 = vmatpush.bf16.msra.mxu0 %v2063
      %2505 = vmatpush.bf16.msra.mxu0 %v2061
      %2506 = vmatpush.bf16.msra.mxu0 %v1967
      %2507 = vmatpush.bf16.msra.mxu0 %v1965
      %2508 = vmatpush.bf16.msra.mxu0 %v1963
      %2509 = vmatpush.bf16.msra.mxu0 %v1961
      %2510 = vmatmul.bf16.gmra.mxu0 %v2426
      %v2511 = vpop.f32.mrf.mxu0
      %v2512 = vadd.f32 %v2419, %v2511
      %v2513 = vpop.f32.mrf.mxu0
      %2514 = vdwg.mxu0
      %2515 = vmatpush.bf16.msra.mxu0 %v2171
      %2516 = vmatpush.bf16.msra.mxu0 %v2169
      %2517 = vmatpush.bf16.msra.mxu0 %v2167
      %2518 = vmatpush.bf16.msra.mxu0 %v2165
      %2519 = vmatpush.bf16.msra.mxu0 %v2119
      %2520 = vmatpush.bf16.msra.mxu0 %v2117
      %2521 = vmatpush.bf16.msra.mxu0 %v2115
      %2522 = vmatpush.bf16.msra.mxu0 %v2113
      %2523 = vmatmul.bf16.gmra.mxu0 %v2427
      %v2524 = vpop.f32.mrf.mxu0
      %v2525 = vadd.f32 %v2512, %v2524
      %v2526 = vpop.f32.mrf.mxu0
      %2527 = vdwg.mxu0
      %2528 = vmatpush.bf16.msra.mxu0 %v2263
      %2529 = vmatpush.bf16.msra.mxu0 %v2261
      %2530 = vmatpush.bf16.msra.mxu0 %v2259
      %2531 = vmatpush.bf16.msra.mxu0 %v2257
      %2532 = vmatpush.bf16.msra.mxu0 %v2211
      %2533 = vmatpush.bf16.msra.mxu0 %v2209
      %2534 = vmatpush.bf16.msra.mxu0 %v2207
      %2535 = vmatpush.bf16.msra.mxu0 %v2205
      %2536 = vmatmul.bf16.gmra.mxu0 %v2428
      %v2537 = vpop.f32.mrf.mxu0
      %v2538 = vadd.f32 %v2525, %v2537
      %v2539 = vpop.f32.mrf.mxu0
      %2540 = vdwg.mxu0
      %2541 = vmatpush.bf16.msra.mxu0 %v2355
      %2542 = vmatpush.bf16.msra.mxu0 %v2353
      %2543 = vmatpush.bf16.msra.mxu0 %v2351
      %2544 = vmatpush.bf16.msra.mxu0 %v2349
      %2545 = vmatpush.bf16.msra.mxu0 %v2315
      %2546 = vmatpush.bf16.msra.mxu0 %v2313
      %2547 = vmatpush.bf16.msra.mxu0 %v2311
      %2548 = vmatpush.bf16.msra.mxu0 %v2309
      %2549 = vmatmul.bf16.gmra.mxu0 %v2429
      %v2550 = vpop.f32.mrf.mxu0
      %v2551 = vadd.f32 %v2538, %v2550
      %v2552 = vpop.f32.mrf.mxu0
      %2553 = vdwg.mxu0
      %2554 = vmatpush.bf16.msra.mxu0 0
      %2555 = vmatpush.bf16.msra.mxu0 0
      %2556 = vmatpush.bf16.msra.mxu0 0
      %2557 = vmatpush.bf16.msra.mxu0 0
      %2558 = vmatpush.bf16.msra.mxu0 %v2407
      %2559 = vmatpush.bf16.msra.mxu0 %v2405
      %2560 = vmatpush.bf16.msra.mxu0 %v2403
      %2561 = vmatpush.bf16.msra.mxu0 %v2401
      %2562 = vmatmul.bf16.gmra.mxu0 %v2435
      %v2563 = vpop.f32.mrf.mxu0
      %v2564 = vadd.f32 %v2551, %v2563
      %v2565 = vpop.f32.mrf.mxu0
      %2566 = vdwg.mxu0
      %2567 = vst [vmem:[#allocation1] ss:$2 sm:$0xff] %v313
      %v2568 = vld.sshfl [vmem:[#allocation1] sm:$0xff pattern:$0x75316420]
      %v2569 = vld.sshfl [vmem:[#allocation1 + $0x8] sm:$0xff pattern:$0x75316420]
      %v2572 = vadd.f32 %v2499, %v2568
      %v2573 = vadd.f32 %v2564, %v2569
      %v2576 = vrot.slane %v2573, 4
      %v2577 = vsel %vm653, %v2572, %v2576
      %2579 = vst [vmem:[%s278] sm:$0xff] %v2577
      %p2580 = scmp.lt.s32.totalorder %s18, 1
      %s2581 = scalar_select %p2580, %s18, 1
      %s2582 = smul.addr %s2581, 2
      %s2583 = smul.addr %s2582, 4
      %s2584 = scalar_lea.vmem %s7, %s2583
      // Predicated region
      $region49: #{dicnn2_forward.1} parent=47 // pred_check
        %p2585 = pneg %p188
      $region50: #{dicnn2_forward.1} parent=47 // pred_check_branch
        %2587 = sbr.rel (%p2585) target = $region52
      $region51: #{dicnn2_forward.1} parent=47 // pred_region
        _
      $region52: #{dicnn2_forward.1} parent=47 // pred_fallthru
        _
    $region48: #{dicnn2_forward.1} parent=5 // pred_fallthru
      _
    %p2588 = scmp.le.s32.totalorder 2, %s13
    // Predicated region
    $region53: #{dicnn2_forward.1} parent=5 // pred_check
      %p2589 = pneg %p2588
    $region54: #{dicnn2_forward.1} parent=5 // pred_check_branch
      %2591 = sbr.rel (%p2589) target = $region56
    $region55: #{dicnn2_forward.1} parent=5 // pred_region
      %s2592 = ssub.s32 %s13, 2
      // Predicated region
      $region57: #{dicnn2_forward.1} parent=55 // pred_check
        %p2593 = pneg %p194
      $region58: #{dicnn2_forward.1} parent=55 // pred_check_branch
        %2595 = sbr.rel (%p2593) target = $region60
      $region59: #{dicnn2_forward.1} parent=55 // pred_region
        %p2596 = scmp.lt.s32.totalorder %s19, 1
        %s2597 = scalar_select %p2596, %s19, 1
        %s2598 = smul.addr %s2597, 2
        %s2599 = smul.addr %s2598, 4
        %s2600 = scalar_lea.vmem %s7, %s2599
      $region60: #{dicnn2_forward.1} parent=55 // pred_fallthru
        _
    $region56: #{dicnn2_forward.1} parent=5 // pred_fallthru
      _
  $region6: #{dicnn2_forward.1} parent=0 // loop_footer
    %s17 = sadd.s32 1, %s13
  $region7: #{dicnn2_forward.1} parent=0 // loop_footer_branch
    %12 = sbr.rel target = $region3
  $region8: #{dicnn2_forward.1} parent=0 // loop_exit
    _

</llo_original>
